<compile_context>
chip_gen: v5e
topology: v5e:2x2
jax: 0.10.0
libtpu: 0.0.40
codegen_flags: <defaults>
</compile_context>

<pallas_src>
import jax
import jax.numpy as jnp
from jax.experimental import pallas as pl
from jax.experimental.pallas import tpu as pltpu


def _fold_bn_into_conv(w_oihw, gamma, beta, rm, rv, eps=1e-5):
    """Fold eval-mode BatchNorm into the conv weight (per-Cout scale) + bias.

    Returns (bf16 folded OIHW weight, f32 bias). The bf16 quantization here is
    the single source of truth used by both the Pallas path and the reference.
    """
    scale = gamma / jnp.sqrt(rv + eps)                     # (Cout,)
    bias = (beta - rm * scale).astype(jnp.float32)         # (Cout,)
    w_folded = (w_oihw * scale[:, None, None, None]).astype(jnp.bfloat16)
    return w_folded, bias


def _conv_bn_lrelu_stage(x_nchw, w_folded_bf16, bias):
    """One conv(3x3 reflect) + folded-BN + LeakyReLU stage. NCHW in, NCHW out.

    The kernel works on the flattened reflect-padded image: for tap (kh, kw)
    the needed (Cin, H*W) window is a contiguous slice of the flattened
    (Cin, (H+2)*(W+2)) image starting at kh*(W+2)+kw with length H*(W+2);
    the 2 extra columns per output row land in the padded width and are
    trimmed by the wrapper.
    """
    N, Cin, H, W = x_nchw.shape
    Cout = w_folded_bf16.shape[0]
    Hp, Wp = H + 2, W + 2
    M = H * Wp                               # per-image output width (incl. 2 trim cols/row)
    Lreal = Hp * Wp + 2                      # +2 so the last tap's slice stays in bounds
    Lflat = ((Lreal + 127) // 128) * 128     # round lanes up to a multiple of 128

    # --- wrapper-side glue (plain JAX, fuses under jit) ---
    xb = x_nchw.astype(jnp.bfloat16)
    xp = jnp.pad(xb, ((0, 0), (0, 0), (1, 1), (1, 1)), mode="reflect")
    x_flat = xp.reshape(N, Cin, Hp * Wp)
    x_flat = jnp.pad(x_flat, ((0, 0), (0, 0), (0, Lflat - Hp * Wp)))   # (N, Cin, Lflat) bf16

    # taps: (9, Cout, Cin), tap index = kh*3 + kw  (BN scale already folded in)
    w_taps = jnp.transpose(w_folded_bf16, (2, 3, 0, 1)).reshape(9, Cout, Cin)
    bias2d = bias.reshape(Cout, 1)

    def kernel(x_ref, w_ref, b_ref, o_ref):
        # x_ref: (Cin, Lflat) bf16   flattened reflect-padded image
        # w_ref: (9, Cout, Cin) bf16 scale-folded taps
        # b_ref: (Cout, 1) f32       folded BN bias
        # o_ref: (Cout, M) f32       spatial (lane-dense) output
        x = x_ref[...]                                   # load once, slice as values
        acc = jnp.zeros((Cout, M), jnp.float32)
        for kh in range(3):
            for kw in range(3):
                s = kh * Wp + kw
                acc = acc + jnp.dot(w_ref[kh * 3 + kw], x[:, s:s + M],
                                    preferred_element_type=jnp.float32)
        y = acc + b_ref[...]                             # folded BN bias
        o_ref[...] = jnp.where(y > 0.0, y, 0.01 * y).astype(o_ref.dtype)   # LeakyReLU(0.01)

    out = pl.pallas_call(
        kernel,
        out_shape=jax.ShapeDtypeStruct((N, Cout, M), jnp.float32),
        grid=(N,),
        in_specs=[
            pl.BlockSpec((None, Cin, Lflat), lambda n: (n, 0, 0)),
            pl.BlockSpec((9, Cout, Cin), lambda n: (0, 0, 0)),
            pl.BlockSpec((Cout, 1), lambda n: (0, 0)),
        ],
        out_specs=pl.BlockSpec((None, Cout, M), lambda n: (n, 0, 0)),
        compiler_params=pltpu.CompilerParams(dimension_semantics=("parallel",)),
    )(x_flat, w_taps, bias2d)

    # trim the 2 padded-width columns per row; stays NCHW.
    return out.reshape(N, Cout, H, Wp)[:, :, :, :W]


def conv_block_forward(x_nchw, params):
    """Forward of Conv_Block. Input/output in PyTorch NCHW layout."""
    w1, b1 = _fold_bn_into_conv(params["w1"], params["gamma1"], params["beta1"],
                                params["rm1"], params["rv1"])
    w2, b2 = _fold_bn_into_conv(params["w2"], params["gamma2"], params["beta2"],
                                params["rm2"], params["rv2"])
    h = _conv_bn_lrelu_stage(x_nchw, w1, b1)   # Dropout2d == identity in eval
    y = _conv_bn_lrelu_stage(h, w2, b2)
    return y


def _reference_forward(x_nchw, params):
    """Pure-JAX reference (lax conv) using the same bf16 quantization points."""
    def stage(x, w_folded_bf16, bias):
        xb = x.astype(jnp.bfloat16).astype(jnp.float32)
        xp = jnp.pad(xb, ((0, 0), (0, 0), (1, 1), (1, 1)), mode="reflect")
        y = jax.lax.conv_general_dilated(
            xp, w_folded_bf16.astype(jnp.float32),
            window_strides=(1, 1), padding="VALID",
            dimension_numbers=("NCHW", "OIHW", "NCHW"))
        y = y + bias[None, :, None, None]
        return jnp.where(y > 0, y, 0.01 * y)

    w1, b1 = _fold_bn_into_conv(params["w1"], params["gamma1"], params["beta1"],
                                params["rm1"], params["rv1"])
    w2, b2 = _fold_bn_into_conv(params["w2"], params["gamma2"], params["beta2"],
                                params["rm2"], params["rv2"])
    h = stage(x_nchw, w1, b1)
    return stage(h, w2, b2)


def make_params(key, in_channel, out_channel):
    ks = jax.random.split(key, 10)
    f32 = jnp.float32
    return {
        # conv weights stored OIHW like PyTorch: (Cout, Cin, 3, 3)
        "w1": 0.1 * jax.random.normal(ks[0], (out_channel, in_channel, 3, 3), f32),
        "w2": 0.1 * jax.random.normal(ks[1], (out_channel, out_channel, 3, 3), f32),
        "gamma1": jax.random.uniform(ks[2], (out_channel,), f32, 0.5, 1.5),
        "beta1": 0.1 * jax.random.normal(ks[3], (out_channel,), f32),
        "rm1": 0.1 * jax.random.normal(ks[4], (out_channel,), f32),
        "rv1": jax.random.uniform(ks[5], (out_channel,), f32, 0.5, 1.5),
        "gamma2": jax.random.uniform(ks[6], (out_channel,), f32, 0.5, 1.5),
        "beta2": 0.1 * jax.random.normal(ks[7], (out_channel,), f32),
        "rm2": 0.1 * jax.random.normal(ks[8], (out_channel,), f32),
        "rv2": jax.random.uniform(ks[9], (out_channel,), f32, 0.5, 1.5),
    }


if __name__ == "__main__":
    key = jax.random.PRNGKey(0)
    k_x, k_p = jax.random.split(key)

    N, Cin, Cout, H, W = 2, 4, 8, 16, 16
    x = jax.random.normal(k_x, (N, Cin, H, W), jnp.float32)   # NCHW like PyTorch
    params = make_params(k_p, Cin, Cout)

    out = jax.jit(conv_block_forward)(x, params)
    out = jax.block_until_ready(out)

    ref = _reference_forward(x, params)
    assert out.shape == (N, Cout, H, W)
    # bf16 MXU operands (f32 accumulate) -> tolerance loosened vs pure-f32 math
    assert jnp.allclose(out, ref, atol=1e-2, rtol=1e-2), "mismatch vs reference"

    print("KERNEL_OK")
</pallas_src>

<mosaic_0001>
module attributes {stable_mosaic.version = 11 : i64} {
  func.func @kernel(%arg0: i32, %arg1: memref<1x4x384xbf16, #tpu.memory_space<vmem>>, %arg2: memref<9x8x4xbf16, #tpu.memory_space<vmem>>, %arg3: memref<8x1xf32, #tpu.memory_space<vmem>>, %arg4: memref<1x8x288xf32, #tpu.memory_space<vmem>>) attributes {dimension_semantics = [#tpu.dimension_semantics<parallel>], iteration_bounds = array<i64: 2>, scalar_prefetch = 0 : i64, scratch_operands = 0 : i64, tpu.core_type = #tpu.core_type<tc>, window_params = [{transform_indices = @transform_0, window_bounds = array<i64: 1, 4, 384>}, {pipeline_mode = #tpu.pipeline_mode<synchronous>, transform_indices = @transform_1, window_bounds = array<i64: 9, 8, 4>}, {pipeline_mode = #tpu.pipeline_mode<synchronous>, transform_indices = @transform_2, window_bounds = array<i64: 8, 1>}, {transform_indices = @transform_3, window_bounds = array<i64: 1, 8, 288>}]} {
    %c0 = arith.constant 0 : index
    %c0_0 = arith.constant 0 : index
    %c0_1 = arith.constant 0 : index
    %0 = vector.load %arg1[%c0, %c0_0, %c0_1] : memref<1x4x384xbf16, #tpu.memory_space<vmem>>, vector<1x4x384xbf16>
    %1 = vector.shape_cast %0 : vector<1x4x384xbf16> to vector<4x384xbf16>
    %cst = arith.constant 0.000000e+00 : f32
    %2 = vector.broadcast %cst : f32 to vector<8x288xf32>
    %c0_2 = arith.constant 0 : index
    %c0_3 = arith.constant 0 : index
    %c0_4 = arith.constant 0 : index
    %3 = vector.load %arg2[%c0_2, %c0_3, %c0_4] : memref<9x8x4xbf16, #tpu.memory_space<vmem>>, vector<1x8x4xbf16>
    %4 = vector.shape_cast %3 : vector<1x8x4xbf16> to vector<8x4xbf16>
    %5 = vector.extract_strided_slice %1 {offsets = [0, 0], sizes = [4, 288], strides = [1, 1]} : vector<4x384xbf16> to vector<4x288xbf16>
    %cst_5 = arith.constant dense<0.000000e+00> : vector<8x288xf32>
    %6 = tpu.matmul %4, %5, %cst_5 {dimension_numbers = #tpu.dot_dimension_numbers<[1], [0], [0], [1], [0, 0, 1, 1], [], []>} : vector<8x4xbf16>, vector<4x288xbf16>, vector<8x288xf32> -> vector<8x288xf32>
    %7 = arith.addf %2, %6 : vector<8x288xf32>
    %c1 = arith.constant 1 : index
    %c0_6 = arith.constant 0 : index
    %c0_7 = arith.constant 0 : index
    %8 = vector.load %arg2[%c1, %c0_6, %c0_7] : memref<9x8x4xbf16, #tpu.memory_space<vmem>>, vector<1x8x4xbf16>
    %9 = vector.shape_cast %8 : vector<1x8x4xbf16> to vector<8x4xbf16>
    %10 = vector.extract_strided_slice %1 {offsets = [0, 1], sizes = [4, 288], strides = [1, 1]} : vector<4x384xbf16> to vector<4x288xbf16>
    %cst_8 = arith.constant dense<0.000000e+00> : vector<8x288xf32>
    %11 = tpu.matmul %9, %10, %cst_8 {dimension_numbers = #tpu.dot_dimension_numbers<[1], [0], [0], [1], [0, 0, 1, 1], [], []>} : vector<8x4xbf16>, vector<4x288xbf16>, vector<8x288xf32> -> vector<8x288xf32>
    %12 = arith.addf %7, %11 : vector<8x288xf32>
    %c2 = arith.constant 2 : index
    %c0_9 = arith.constant 0 : index
    %c0_10 = arith.constant 0 : index
    %13 = vector.load %arg2[%c2, %c0_9, %c0_10] : memref<9x8x4xbf16, #tpu.memory_space<vmem>>, vector<1x8x4xbf16>
    %14 = vector.shape_cast %13 : vector<1x8x4xbf16> to vector<8x4xbf16>
    %15 = vector.extract_strided_slice %1 {offsets = [0, 2], sizes = [4, 288], strides = [1, 1]} : vector<4x384xbf16> to vector<4x288xbf16>
    %cst_11 = arith.constant dense<0.000000e+00> : vector<8x288xf32>
    %16 = tpu.matmul %14, %15, %cst_11 {dimension_numbers = #tpu.dot_dimension_numbers<[1], [0], [0], [1], [0, 0, 1, 1], [], []>} : vector<8x4xbf16>, vector<4x288xbf16>, vector<8x288xf32> -> vector<8x288xf32>
    %17 = arith.addf %12, %16 : vector<8x288xf32>
    %c3 = arith.constant 3 : index
    %c0_12 = arith.constant 0 : index
    %c0_13 = arith.constant 0 : index
    %18 = vector.load %arg2[%c3, %c0_12, %c0_13] : memref<9x8x4xbf16, #tpu.memory_space<vmem>>, vector<1x8x4xbf16>
    %19 = vector.shape_cast %18 : vector<1x8x4xbf16> to vector<8x4xbf16>
    %20 = vector.extract_strided_slice %1 {offsets = [0, 18], sizes = [4, 288], strides = [1, 1]} : vector<4x384xbf16> to vector<4x288xbf16>
    %cst_14 = arith.constant dense<0.000000e+00> : vector<8x288xf32>
    %21 = tpu.matmul %19, %20, %cst_14 {dimension_numbers = #tpu.dot_dimension_numbers<[1], [0], [0], [1], [0, 0, 1, 1], [], []>} : vector<8x4xbf16>, vector<4x288xbf16>, vector<8x288xf32> -> vector<8x288xf32>
    %22 = arith.addf %17, %21 : vector<8x288xf32>
    %c4 = arith.constant 4 : index
    %c0_15 = arith.constant 0 : index
    %c0_16 = arith.constant 0 : index
    %23 = vector.load %arg2[%c4, %c0_15, %c0_16] : memref<9x8x4xbf16, #tpu.memory_space<vmem>>, vector<1x8x4xbf16>
    %24 = vector.shape_cast %23 : vector<1x8x4xbf16> to vector<8x4xbf16>
    %25 = vector.extract_strided_slice %1 {offsets = [0, 19], sizes = [4, 288], strides = [1, 1]} : vector<4x384xbf16> to vector<4x288xbf16>
    %cst_17 = arith.constant dense<0.000000e+00> : vector<8x288xf32>
    %26 = tpu.matmul %24, %25, %cst_17 {dimension_numbers = #tpu.dot_dimension_numbers<[1], [0], [0], [1], [0, 0, 1, 1], [], []>} : vector<8x4xbf16>, vector<4x288xbf16>, vector<8x288xf32> -> vector<8x288xf32>
    %27 = arith.addf %22, %26 : vector<8x288xf32>
    %c5 = arith.constant 5 : index
    %c0_18 = arith.constant 0 : index
    %c0_19 = arith.constant 0 : index
    %28 = vector.load %arg2[%c5, %c0_18, %c0_19] : memref<9x8x4xbf16, #tpu.memory_space<vmem>>, vector<1x8x4xbf16>
    %29 = vector.shape_cast %28 : vector<1x8x4xbf16> to vector<8x4xbf16>
    %30 = vector.extract_strided_slice %1 {offsets = [0, 20], sizes = [4, 288], strides = [1, 1]} : vector<4x384xbf16> to vector<4x288xbf16>
    %cst_20 = arith.constant dense<0.000000e+00> : vector<8x288xf32>
    %31 = tpu.matmul %29, %30, %cst_20 {dimension_numbers = #tpu.dot_dimension_numbers<[1], [0], [0], [1], [0, 0, 1, 1], [], []>} : vector<8x4xbf16>, vector<4x288xbf16>, vector<8x288xf32> -> vector<8x288xf32>
    %32 = arith.addf %27, %31 : vector<8x288xf32>
    %c6 = arith.constant 6 : index
    %c0_21 = arith.constant 0 : index
    %c0_22 = arith.constant 0 : index
    %33 = vector.load %arg2[%c6, %c0_21, %c0_22] : memref<9x8x4xbf16, #tpu.memory_space<vmem>>, vector<1x8x4xbf16>
    %34 = vector.shape_cast %33 : vector<1x8x4xbf16> to vector<8x4xbf16>
    %35 = vector.extract_strided_slice %1 {offsets = [0, 36], sizes = [4, 288], strides = [1, 1]} : vector<4x384xbf16> to vector<4x288xbf16>
    %cst_23 = arith.constant dense<0.000000e+00> : vector<8x288xf32>
    %36 = tpu.matmul %34, %35, %cst_23 {dimension_numbers = #tpu.dot_dimension_numbers<[1], [0], [0], [1], [0, 0, 1, 1], [], []>} : vector<8x4xbf16>, vector<4x288xbf16>, vector<8x288xf32> -> vector<8x288xf32>
    %37 = arith.addf %32, %36 : vector<8x288xf32>
    %c7 = arith.constant 7 : index
    %c0_24 = arith.constant 0 : index
    %c0_25 = arith.constant 0 : index
    %38 = vector.load %arg2[%c7, %c0_24, %c0_25] : memref<9x8x4xbf16, #tpu.memory_space<vmem>>, vector<1x8x4xbf16>
    %39 = vector.shape_cast %38 : vector<1x8x4xbf16> to vector<8x4xbf16>
    %40 = vector.extract_strided_slice %1 {offsets = [0, 37], sizes = [4, 288], strides = [1, 1]} : vector<4x384xbf16> to vector<4x288xbf16>
    %cst_26 = arith.constant dense<0.000000e+00> : vector<8x288xf32>
    %41 = tpu.matmul %39, %40, %cst_26 {dimension_numbers = #tpu.dot_dimension_numbers<[1], [0], [0], [1], [0, 0, 1, 1], [], []>} : vector<8x4xbf16>, vector<4x288xbf16>, vector<8x288xf32> -> vector<8x288xf32>
    %42 = arith.addf %37, %41 : vector<8x288xf32>
    %c8 = arith.constant 8 : index
    %c0_27 = arith.constant 0 : index
    %c0_28 = arith.constant 0 : index
    %43 = vector.load %arg2[%c8, %c0_27, %c0_28] : memref<9x8x4xbf16, #tpu.memory_space<vmem>>, vector<1x8x4xbf16>
    %44 = vector.shape_cast %43 : vector<1x8x4xbf16> to vector<8x4xbf16>
    %45 = vector.extract_strided_slice %1 {offsets = [0, 38], sizes = [4, 288], strides = [1, 1]} : vector<4x384xbf16> to vector<4x288xbf16>
    %cst_29 = arith.constant dense<0.000000e+00> : vector<8x288xf32>
    %46 = tpu.matmul %44, %45, %cst_29 {dimension_numbers = #tpu.dot_dimension_numbers<[1], [0], [0], [1], [0, 0, 1, 1], [], []>} : vector<8x4xbf16>, vector<4x288xbf16>, vector<8x288xf32> -> vector<8x288xf32>
    %47 = arith.addf %42, %46 : vector<8x288xf32>
    %c0_30 = arith.constant 0 : index
    %c0_31 = arith.constant 0 : index
    %48 = vector.load %arg3[%c0_30, %c0_31] : memref<8x1xf32, #tpu.memory_space<vmem>>, vector<8x1xf32>
    %49 = vector.broadcast %48 : vector<8x1xf32> to vector<8x288xf32>
    %50 = arith.addf %47, %49 : vector<8x288xf32>
    %cst_32 = arith.constant 0.000000e+00 : f32
    %51 = vector.broadcast %cst_32 : f32 to vector<8x288xf32>
    %52 = arith.cmpf ogt, %50, %51 : vector<8x288xf32>
    %cst_33 = arith.constant 0.00999999977 : f32
    %53 = vector.broadcast %cst_33 : f32 to vector<8x288xf32>
    %54 = arith.mulf %53, %50 : vector<8x288xf32>
    %55 = arith.select %52, %50, %54 : vector<8x288xi1>, vector<8x288xf32>
    %c0_34 = arith.constant 0 : index
    %c0_35 = arith.constant 0 : index
    %c0_36 = arith.constant 0 : index
    %56 = vector.load %arg4[%c0_34, %c0_35, %c0_36] : memref<1x8x288xf32, #tpu.memory_space<vmem>>, vector<1x8x288xf32>
    %57 = vector.shape_cast %56 : vector<1x8x288xf32> to vector<8x288xf32>
    %58 = vector.shape_cast %55 : vector<8x288xf32> to vector<1x8x288xf32>
    tpu.vector_store %arg4[%c0_34, %c0_35, %c0_36], %58 {strides = array<i32>} : memref<1x8x288xf32, #tpu.memory_space<vmem>>, vector<1x8x288xf32>,
    return
  }
  func.func @transform_0(%arg0: i32) -> (i32, i32, i32) {
    %c0_i32 = arith.constant 0 : i32
    %c0_i32_0 = arith.constant 0 : i32
    %c0_i32_1 = arith.constant 0 : i32
    return %arg0, %c0_i32, %c0_i32_0 : i32, i32, i32
  }
  func.func @transform_1(%arg0: i32) -> (i32, i32, i32) {
    %c0_i32 = arith.constant 0 : i32
    %c0_i32_0 = arith.constant 0 : i32
    %c0_i32_1 = arith.constant 0 : i32
    %c0_i32_2 = arith.constant 0 : i32
    return %c0_i32, %c0_i32_0, %c0_i32_1 : i32, i32, i32
  }
  func.func @transform_2(%arg0: i32) -> (i32, i32) {
    %c0_i32 = arith.constant 0 : i32
    %c0_i32_0 = arith.constant 0 : i32
    %c0_i32_1 = arith.constant 0 : i32
    return %c0_i32, %c0_i32_0 : i32, i32
  }
  func.func @transform_3(%arg0: i32) -> (i32, i32, i32) {
    %c0_i32 = arith.constant 0 : i32
    %c0_i32_0 = arith.constant 0 : i32
    %c0_i32_1 = arith.constant 0 : i32
    return %arg0, %c0_i32, %c0_i32_0 : i32, i32, i32
  }
}

module attributes {stable_mosaic.version = 11 : i64} {
  func.func @kernel(%arg0: i32, %arg1: memref<1x8x384xbf16, #tpu.memory_space<vmem>>, %arg2: memref<9x8x8xbf16, #tpu.memory_space<vmem>>, %arg3: memref<8x1xf32, #tpu.memory_space<vmem>>, %arg4: memref<1x8x288xf32, #tpu.memory_space<vmem>>) attributes {dimension_semantics = [#tpu.dimension_semantics<parallel>], iteration_bounds = array<i64: 2>, scalar_prefetch = 0 : i64, scratch_operands = 0 : i64, tpu.core_type = #tpu.core_type<tc>, window_params = [{transform_indices = @transform_0, window_bounds = array<i64: 1, 8, 384>}, {pipeline_mode = #tpu.pipeline_mode<synchronous>, transform_indices = @transform_1, window_bounds = array<i64: 9, 8, 8>}, {pipeline_mode = #tpu.pipeline_mode<synchronous>, transform_indices = @transform_2, window_bounds = array<i64: 8, 1>}, {transform_indices = @transform_3, window_bounds = array<i64: 1, 8, 288>}]} {
    %c0 = arith.constant 0 : index
    %c0_0 = arith.constant 0 : index
    %c0_1 = arith.constant 0 : index
    %0 = vector.load %arg1[%c0, %c0_0, %c0_1] : memref<1x8x384xbf16, #tpu.memory_space<vmem>>, vector<1x8x384xbf16>
    %1 = vector.shape_cast %0 : vector<1x8x384xbf16> to vector<8x384xbf16>
    %cst = arith.constant 0.000000e+00 : f32
    %2 = vector.broadcast %cst : f32 to vector<8x288xf32>
    %c0_2 = arith.constant 0 : index
    %c0_3 = arith.constant 0 : index
    %c0_4 = arith.constant 0 : index
    %3 = vector.load %arg2[%c0_2, %c0_3, %c0_4] : memref<9x8x8xbf16, #tpu.memory_space<vmem>>, vector<1x8x8xbf16>
    %4 = vector.shape_cast %3 : vector<1x8x8xbf16> to vector<8x8xbf16>
    %5 = vector.extract_strided_slice %1 {offsets = [0, 0], sizes = [8, 288], strides = [1, 1]} : vector<8x384xbf16> to vector<8x288xbf16>
    %cst_5 = arith.constant dense<0.000000e+00> : vector<8x288xf32>
    %6 = tpu.matmul %4, %5, %cst_5 {dimension_numbers = #tpu.dot_dimension_numbers<[1], [0], [0], [1], [0, 0, 1, 1], [], []>} : vector<8x8xbf16>, vector<8x288xbf16>, vector<8x288xf32> -> vector<8x288xf32>
    %7 = arith.addf %2, %6 : vector<8x288xf32>
    %c1 = arith.constant 1 : index
    %c0_6 = arith.constant 0 : index
    %c0_7 = arith.constant 0 : index
    %8 = vector.load %arg2[%c1, %c0_6, %c0_7] : memref<9x8x8xbf16, #tpu.memory_space<vmem>>, vector<1x8x8xbf16>
    %9 = vector.shape_cast %8 : vector<1x8x8xbf16> to vector<8x8xbf16>
    %10 = vector.extract_strided_slice %1 {offsets = [0, 1], sizes = [8, 288], strides = [1, 1]} : vector<8x384xbf16> to vector<8x288xbf16>
    %cst_8 = arith.constant dense<0.000000e+00> : vector<8x288xf32>
    %11 = tpu.matmul %9, %10, %cst_8 {dimension_numbers = #tpu.dot_dimension_numbers<[1], [0], [0], [1], [0, 0, 1, 1], [], []>} : vector<8x8xbf16>, vector<8x288xbf16>, vector<8x288xf32> -> vector<8x288xf32>
    %12 = arith.addf %7, %11 : vector<8x288xf32>
    %c2 = arith.constant 2 : index
    %c0_9 = arith.constant 0 : index
    %c0_10 = arith.constant 0 : index
    %13 = vector.load %arg2[%c2, %c0_9, %c0_10] : memref<9x8x8xbf16, #tpu.memory_space<vmem>>, vector<1x8x8xbf16>
    %14 = vector.shape_cast %13 : vector<1x8x8xbf16> to vector<8x8xbf16>
    %15 = vector.extract_strided_slice %1 {offsets = [0, 2], sizes = [8, 288], strides = [1, 1]} : vector<8x384xbf16> to vector<8x288xbf16>
    %cst_11 = arith.constant dense<0.000000e+00> : vector<8x288xf32>
    %16 = tpu.matmul %14, %15, %cst_11 {dimension_numbers = #tpu.dot_dimension_numbers<[1], [0], [0], [1], [0, 0, 1, 1], [], []>} : vector<8x8xbf16>, vector<8x288xbf16>, vector<8x288xf32> -> vector<8x288xf32>
    %17 = arith.addf %12, %16 : vector<8x288xf32>
    %c3 = arith.constant 3 : index
    %c0_12 = arith.constant 0 : index
    %c0_13 = arith.constant 0 : index
    %18 = vector.load %arg2[%c3, %c0_12, %c0_13] : memref<9x8x8xbf16, #tpu.memory_space<vmem>>, vector<1x8x8xbf16>
    %19 = vector.shape_cast %18 : vector<1x8x8xbf16> to vector<8x8xbf16>
    %20 = vector.extract_strided_slice %1 {offsets = [0, 18], sizes = [8, 288], strides = [1, 1]} : vector<8x384xbf16> to vector<8x288xbf16>
    %cst_14 = arith.constant dense<0.000000e+00> : vector<8x288xf32>
    %21 = tpu.matmul %19, %20, %cst_14 {dimension_numbers = #tpu.dot_dimension_numbers<[1], [0], [0], [1], [0, 0, 1, 1], [], []>} : vector<8x8xbf16>, vector<8x288xbf16>, vector<8x288xf32> -> vector<8x288xf32>
    %22 = arith.addf %17, %21 : vector<8x288xf32>
    %c4 = arith.constant 4 : index
    %c0_15 = arith.constant 0 : index
    %c0_16 = arith.constant 0 : index
    %23 = vector.load %arg2[%c4, %c0_15, %c0_16] : memref<9x8x8xbf16, #tpu.memory_space<vmem>>, vector<1x8x8xbf16>
    %24 = vector.shape_cast %23 : vector<1x8x8xbf16> to vector<8x8xbf16>
    %25 = vector.extract_strided_slice %1 {offsets = [0, 19], sizes = [8, 288], strides = [1, 1]} : vector<8x384xbf16> to vector<8x288xbf16>
    %cst_17 = arith.constant dense<0.000000e+00> : vector<8x288xf32>
    %26 = tpu.matmul %24, %25, %cst_17 {dimension_numbers = #tpu.dot_dimension_numbers<[1], [0], [0], [1], [0, 0, 1, 1], [], []>} : vector<8x8xbf16>, vector<8x288xbf16>, vector<8x288xf32> -> vector<8x288xf32>
    %27 = arith.addf %22, %26 : vector<8x288xf32>
    %c5 = arith.constant 5 : index
    %c0_18 = arith.constant 0 : index
    %c0_19 = arith.constant 0 : index
    %28 = vector.load %arg2[%c5, %c0_18, %c0_19] : memref<9x8x8xbf16, #tpu.memory_space<vmem>>, vector<1x8x8xbf16>
    %29 = vector.shape_cast %28 : vector<1x8x8xbf16> to vector<8x8xbf16>
    %30 = vector.extract_strided_slice %1 {offsets = [0, 20], sizes = [8, 288], strides = [1, 1]} : vector<8x384xbf16> to vector<8x288xbf16>
    %cst_20 = arith.constant dense<0.000000e+00> : vector<8x288xf32>
    %31 = tpu.matmul %29, %30, %cst_20 {dimension_numbers = #tpu.dot_dimension_numbers<[1], [0], [0], [1], [0, 0, 1, 1], [], []>} : vector<8x8xbf16>, vector<8x288xbf16>, vector<8x288xf32> -> vector<8x288xf32>
    %32 = arith.addf %27, %31 : vector<8x288xf32>
    %c6 = arith.constant 6 : index
    %c0_21 = arith.constant 0 : index
    %c0_22 = arith.constant 0 : index
    %33 = vector.load %arg2[%c6, %c0_21, %c0_22] : memref<9x8x8xbf16, #tpu.memory_space<vmem>>, vector<1x8x8xbf16>
    %34 = vector.shape_cast %33 : vector<1x8x8xbf16> to vector<8x8xbf16>
    %35 = vector.extract_strided_slice %1 {offsets = [0, 36], sizes = [8, 288], strides = [1, 1]} : vector<8x384xbf16> to vector<8x288xbf16>
    %cst_23 = arith.constant dense<0.000000e+00> : vector<8x288xf32>
    %36 = tpu.matmul %34, %35, %cst_23 {dimension_numbers = #tpu.dot_dimension_numbers<[1], [0], [0], [1], [0, 0, 1, 1], [], []>} : vector<8x8xbf16>, vector<8x288xbf16>, vector<8x288xf32> -> vector<8x288xf32>
    %37 = arith.addf %32, %36 : vector<8x288xf32>
    %c7 = arith.constant 7 : index
    %c0_24 = arith.constant 0 : index
    %c0_25 = arith.constant 0 : index
    %38 = vector.load %arg2[%c7, %c0_24, %c0_25] : memref<9x8x8xbf16, #tpu.memory_space<vmem>>, vector<1x8x8xbf16>
    %39 = vector.shape_cast %38 : vector<1x8x8xbf16> to vector<8x8xbf16>
    %40 = vector.extract_strided_slice %1 {offsets = [0, 37], sizes = [8, 288], strides = [1, 1]} : vector<8x384xbf16> to vector<8x288xbf16>
    %cst_26 = arith.constant dense<0.000000e+00> : vector<8x288xf32>
    %41 = tpu.matmul %39, %40, %cst_26 {dimension_numbers = #tpu.dot_dimension_numbers<[1], [0], [0], [1], [0, 0, 1, 1], [], []>} : vector<8x8xbf16>, vector<8x288xbf16>, vector<8x288xf32> -> vector<8x288xf32>
    %42 = arith.addf %37, %41 : vector<8x288xf32>
    %c8 = arith.constant 8 : index
    %c0_27 = arith.constant 0 : index
    %c0_28 = arith.constant 0 : index
    %43 = vector.load %arg2[%c8, %c0_27, %c0_28] : memref<9x8x8xbf16, #tpu.memory_space<vmem>>, vector<1x8x8xbf16>
    %44 = vector.shape_cast %43 : vector<1x8x8xbf16> to vector<8x8xbf16>
    %45 = vector.extract_strided_slice %1 {offsets = [0, 38], sizes = [8, 288], strides = [1, 1]} : vector<8x384xbf16> to vector<8x288xbf16>
    %cst_29 = arith.constant dense<0.000000e+00> : vector<8x288xf32>
    %46 = tpu.matmul %44, %45, %cst_29 {dimension_numbers = #tpu.dot_dimension_numbers<[1], [0], [0], [1], [0, 0, 1, 1], [], []>} : vector<8x8xbf16>, vector<8x288xbf16>, vector<8x288xf32> -> vector<8x288xf32>
    %47 = arith.addf %42, %46 : vector<8x288xf32>
    %c0_30 = arith.constant 0 : index
    %c0_31 = arith.constant 0 : index
    %48 = vector.load %arg3[%c0_30, %c0_31] : memref<8x1xf32, #tpu.memory_space<vmem>>, vector<8x1xf32>
    %49 = vector.broadcast %48 : vector<8x1xf32> to vector<8x288xf32>
    %50 = arith.addf %47, %49 : vector<8x288xf32>
    %cst_32 = arith.constant 0.000000e+00 : f32
    %51 = vector.broadcast %cst_32 : f32 to vector<8x288xf32>
    %52 = arith.cmpf ogt, %50, %51 : vector<8x288xf32>
    %cst_33 = arith.constant 0.00999999977 : f32
    %53 = vector.broadcast %cst_33 : f32 to vector<8x288xf32>
    %54 = arith.mulf %53, %50 : vector<8x288xf32>
    %55 = arith.select %52, %50, %54 : vector<8x288xi1>, vector<8x288xf32>
    %c0_34 = arith.constant 0 : index
    %c0_35 = arith.constant 0 : index
    %c0_36 = arith.constant 0 : index
    %56 = vector.load %arg4[%c0_34, %c0_35, %c0_36] : memref<1x8x288xf32, #tpu.memory_space<vmem>>, vector<1x8x288xf32>
    %57 = vector.shape_cast %56 : vector<1x8x288xf32> to vector<8x288xf32>
    %58 = vector.shape_cast %55 : vector<8x288xf32> to vector<1x8x288xf32>
    tpu.vector_store %arg4[%c0_34, %c0_35, %c0_36], %58 {strides = array<i32>} : memref<1x8x288xf32, #tpu.memory_space<vmem>>, vector<1x8x288xf32>,
    return
  }
  func.func @transform_0(%arg0: i32) -> (i32, i32, i32) {
    %c0_i32 = arith.constant 0 : i32
    %c0_i32_0 = arith.constant 0 : i32
    %c0_i32_1 = arith.constant 0 : i32
    return %arg0, %c0_i32, %c0_i32_0 : i32, i32, i32
  }
  func.func @transform_1(%arg0: i32) -> (i32, i32, i32) {
    %c0_i32 = arith.constant 0 : i32
    %c0_i32_0 = arith.constant 0 : i32
    %c0_i32_1 = arith.constant 0 : i32
    %c0_i32_2 = arith.constant 0 : i32
    return %c0_i32, %c0_i32_0, %c0_i32_1 : i32, i32, i32
  }
  func.func @transform_2(%arg0: i32) -> (i32, i32) {
    %c0_i32 = arith.constant 0 : i32
    %c0_i32_0 = arith.constant 0 : i32
    %c0_i32_1 = arith.constant 0 : i32
    return %c0_i32, %c0_i32_0 : i32, i32
  }
  func.func @transform_3(%arg0: i32) -> (i32, i32, i32) {
    %c0_i32 = arith.constant 0 : i32
    %c0_i32_0 = arith.constant 0 : i32
    %c0_i32_1 = arith.constant 0 : i32
    return %arg0, %c0_i32, %c0_i32_0 : i32, i32, i32
  }
}

</mosaic_0001>

<llo_original>
// kernel: conv_block_forward.2
$region0: #{conv_block_forward.2}
  #allocation0 [shape = 'u32[]', space=smem, size = 0x4, offset = 0x4, fixed_abs, tag = 'smem constant byte address 0x4 - core index']
  #allocation1 [shape = 'u32[72,128]{1,0:T(1,128)}', space=vmem, size = 0x9000, scoped, tag = 'internal scratch']
  %s0 = inlined_call_operand.vmem [shape: bf16[2,4,384], index: 0, kind: input, shape index: {}]
  %s1 = inlined_call_operand.vmem [shape: bf16[9,8,4], index: 1, kind: input, shape index: {}]
  %s2 = inlined_call_operand.vmem [shape: f32[8,1], index: 2, kind: input, shape index: {}]
  %s3 = inlined_call_operand.vmem [shape: f32[2,8,288], index: 3, kind: output, shape index: {}]
  %s4 = sld [smem:[#allocation0]]
  $region45: #{conv_block_forward.2} parent=0
    _
  %s6 = ssub.s32 1, %s4
  %s7 = scalar_select 0, %s6, %s4
  loop: start=0, step=1, limit=4
  $region2: #{conv_block_forward.2} parent=0 // loop_pre_header
    _
  $region3: #{conv_block_forward.2} parent=0 // loop_header
    %s9 = sphi 0, %s13
    %p10 = scmp.ge.s32.totalorder %s9, 4
    %s19 = sphi 0, %s21
    %s22 = sphi 0, %s19
    %s23 = sphi 0, %s22
    %s39 = sphi 0, %s23
    %s43 = sphi 0, %s43
    %s45 = sphi 0, %s43
    %s46 = sphi 0, %s45
    %s60 = sphi 0, %s46
    %s64 = sphi 0, %s64
    %s66 = sphi 0, %s64
    %s67 = sphi 0, %s66
    %s81 = sphi 0, %s67
    %s87 = sphi 0, %s89
    %s90 = sphi 0, %s87
    %s91 = sphi 0, %s90
    %s107 = sphi 0, %s91
  $region4: #{conv_block_forward.2} parent=0 // loop_header_branch
    %12 = sbr.rel (%p10) target = $region8
  $region5: #{conv_block_forward.2} parent=0 // loop_body
    %s14 = ssub.s32 %s9, 1
    %s15 = ssub.s32 %s9, 2
    %s16 = sadd.s32 %s9, 1
    %s17 = ssub.s32 %s9, %s16
    %p18 = scmp.eq.s32.totalorder %s17, 0
    %s20 = sadd.s32 %s19, 1
    %s21 = scalar_select %p18, %s19, %s20
    %p24 = pneg %p18
    %p25 = scmp.eq.s32.totalorder %s9, 1
    %p26 = por %p24, %p25
    %p27 = scmp.ne.s32.totalorder %s19, %s22
    %p28 = scmp.eq.s32.totalorder %s9, 0
    %p29 = por %p27, %p28
    %p30 = scmp.ne.s32.totalorder %s19, %s22
    %p31 = scmp.eq.s32.totalorder %s14, 1
    %p32 = por %p30, %p31
    %p33 = scmp.ne.s32.totalorder %s22, %s23
    %p34 = scmp.eq.s32.totalorder %s14, 0
    %p35 = por %p33, %p34
    %p36 = scmp.ne.s32.totalorder %s22, %s23
    %p37 = scmp.eq.s32.totalorder %s15, 1
    %p38 = por %p36, %p37
    %p40 = scmp.ne.s32.totalorder %s23, %s39
    %p41 = scmp.eq.s32.totalorder %s15, 0
    %p42 = por %p40, %p41
    %s44 = sadd.s32 %s43, 1
    %p47 = scmp.eq.s32.totalorder %s9, 1
    %p48 = scmp.ne.s32.totalorder %s43, %s45
    %p49 = scmp.eq.s32.totalorder %s9, 0
    %p50 = por %p48, %p49
    %p51 = scmp.ne.s32.totalorder %s43, %s45
    %p52 = scmp.eq.s32.totalorder %s14, 1
    %p53 = por %p51, %p52
    %p54 = scmp.ne.s32.totalorder %s45, %s46
    %p55 = scmp.eq.s32.totalorder %s14, 0
    %p56 = por %p54, %p55
    %p57 = scmp.ne.s32.totalorder %s45, %s46
    %p58 = scmp.eq.s32.totalorder %s15, 1
    %p59 = por %p57, %p58
    %p61 = scmp.ne.s32.totalorder %s46, %s60
    %p62 = scmp.eq.s32.totalorder %s15, 0
    %p63 = por %p61, %p62
    %s65 = sadd.s32 %s64, 1
    %p68 = scmp.eq.s32.totalorder %s9, 1
    %p69 = scmp.ne.s32.totalorder %s64, %s66
    %p70 = scmp.eq.s32.totalorder %s9, 0
    %p71 = por %p69, %p70
    %p72 = scmp.ne.s32.totalorder %s64, %s66
    %p73 = scmp.eq.s32.totalorder %s14, 1
    %p74 = por %p72, %p73
    %p75 = scmp.ne.s32.totalorder %s66, %s67
    %p76 = scmp.eq.s32.totalorder %s14, 0
    %p77 = por %p75, %p76
    %p78 = scmp.ne.s32.totalorder %s66, %s67
    %p79 = scmp.eq.s32.totalorder %s15, 1
    %p80 = por %p78, %p79
    %p82 = scmp.ne.s32.totalorder %s67, %s81
    %p83 = scmp.eq.s32.totalorder %s15, 0
    %p84 = por %p82, %p83
    %s85 = ssub.s32 %s9, %s16
    %p86 = scmp.eq.s32.totalorder %s85, 0
    %s88 = sadd.s32 %s87, 1
    %s89 = scalar_select %p86, %s87, %s88
    %p92 = pneg %p86
    %p93 = scmp.eq.s32.totalorder %s9, 1
    %p94 = por %p92, %p93
    %p95 = scmp.ne.s32.totalorder %s87, %s90
    %p96 = scmp.eq.s32.totalorder %s9, 0
    %p97 = por %p95, %p96
    %p98 = scmp.ne.s32.totalorder %s87, %s90
    %p99 = scmp.eq.s32.totalorder %s14, 1
    %p100 = por %p98, %p99
    %p101 = scmp.ne.s32.totalorder %s90, %s91
    %p102 = scmp.eq.s32.totalorder %s14, 0
    %p103 = por %p101, %p102
    %p104 = scmp.ne.s32.totalorder %s90, %s91
    %p105 = scmp.eq.s32.totalorder %s15, 1
    %p106 = por %p104, %p105
    %p108 = scmp.ne.s32.totalorder %s91, %s107
    %p109 = scmp.eq.s32.totalorder %s15, 0
    %p110 = por %p108, %p109
    %p111 = scmp.le.s32.totalorder 1, %s9
    %p112 = scmp.lt.s32.totalorder %s9, 3
    %p113 = pnand %p111, %p112
    %p114 = pneg %p113
    // Predicated region
    $region9: #{conv_block_forward.2} parent=5 // pred_check
      _
    $region10: #{conv_block_forward.2} parent=5 // pred_check_branch
      %116 = sbr.rel (%p113) target = $region12
    $region11: #{conv_block_forward.2} parent=5 // pred_region
      %s117 = ssub.s32 %s9, 1
      // Predicated region
      $region13: #{conv_block_forward.2} parent=11 // pred_check
        %p118 = pneg %p56
      $region14: #{conv_block_forward.2} parent=11 // pred_check_branch
        %120 = sbr.rel (%p118) target = $region16
      $region15: #{conv_block_forward.2} parent=11 // pred_region
        _
      $region16: #{conv_block_forward.2} parent=11 // pred_fallthru
        _
      // Predicated region
      $region17: #{conv_block_forward.2} parent=11 // pred_check
        %p121 = pneg %p77
      $region18: #{conv_block_forward.2} parent=11 // pred_check_branch
        %123 = sbr.rel (%p121) target = $region20
      $region19: #{conv_block_forward.2} parent=11 // pred_region
        _
      $region20: #{conv_block_forward.2} parent=11 // pred_fallthru
        _
    $region12: #{conv_block_forward.2} parent=5 // pred_fallthru
      _
    %p124 = scmp.lt.s32.totalorder %s9, 2
    // Predicated region
    $region21: #{conv_block_forward.2} parent=5 // pred_check
      %p125 = pneg %p124
    $region22: #{conv_block_forward.2} parent=5 // pred_check_branch
      %127 = sbr.rel (%p125) target = $region24
    $region23: #{conv_block_forward.2} parent=5 // pred_region
      // Predicated region
      $region25: #{conv_block_forward.2} parent=23 // pred_check
        %p128 = pneg %p29
      $region26: #{conv_block_forward.2} parent=23 // pred_check_branch
        %130 = sbr.rel (%p128) target = $region28
      $region27: #{conv_block_forward.2} parent=23 // pred_region
        %p131 = scmp.lt.s32.totalorder %s9, 1
        %s132 = scalar_select %p131, %s9, 1
        %s133 = smul.addr %s132, 3
        %s134 = smul.addr %s133, 2
        %s135 = scalar_lea.vmem %s0, %s134
      $region28: #{conv_block_forward.2} parent=23 // pred_fallthru
        _
    $region24: #{conv_block_forward.2} parent=5 // pred_fallthru
      _
    %p136 = scmp.le.s32.totalorder 1, %s9
    %p137 = scmp.lt.s32.totalorder %s9, 3
    %p138 = pnand %p136, %p137
    %p139 = pneg %p138
    // Predicated region
    $region29: #{conv_block_forward.2} parent=5 // pred_check
      _
    $region30: #{conv_block_forward.2} parent=5 // pred_check_branch
      %141 = sbr.rel (%p138) target = $region32
    $region31: #{conv_block_forward.2} parent=5 // pred_region
      %s142 = ssub.s32 %s9, 1
      %p143 = scmp.lt.s32.totalorder %s14, 1
      %s144 = scalar_select %p143, %s14, 1
      %s145 = smul.addr %s144, 3
      %s146 = smul.addr %s145, 2
      %s147 = scalar_lea.vmem %s0, %s146
      %p148 = pneg %p35
      %p149 = pneg %p32
      %p150 = pneg %p56
      %p151 = pneg %p53
      %p152 = pneg %p77
      %p153 = pneg %p74
      %p154 = pneg %p103
      %p155 = pneg %p100
      %p156 = scmp.lt.s32.totalorder %s14, 1
      %s157 = scalar_select %p156, %s14, 1
      %s158 = smul.addr %s157, 3
      %s159 = smul.addr %s158, 8
      %s160 = scalar_lea.vmem %s3, %s159
      %p161 = scmp.lt.s32.totalorder %s14, 1
      %s162 = scalar_select %p161, %s14, 1
      %s163 = smul.addr %s162, 3
      %s164 = smul.addr %s163, 2
      %s165 = scalar_lea.vmem %s0, %s164
      %p166 = scmp.lt.s32.totalorder %s14, 1
      %s167 = scalar_select %p166, %s14, 1
      %s168 = smul.addr %s167, 3
      %s169 = smul.addr %s168, 8
      %s170 = scalar_lea.vmem %s3, %s169
      %v172 = vld [vmem:[%s165] sm:$0x3f]
      %v173 = vld [vmem:[%s1] sm:$0xf]
      %s174 = scalar_lea.vmem %s1, 4
      %v175 = vld [vmem:[%s174] sm:$0xf]
      %177 = vst [vmem:[#allocation1] ss:$4 sm:$0xff] %v172
      %v178 = vld.sshfl [vmem:[#allocation1] sm:$0xff pattern:$0x73625140]
      %v180 = vld.sshfl [vmem:[#allocation1 + $0x8] sm:$0xff pattern:$0x73625140]
      %v182 = vld.sshfl [vmem:[#allocation1 + $0x10] sm:$0xff pattern:$0x73625140]
      %184 = vrot.lane.b32.xlu0 %v178, 127
      %v185 = vpop.permute.xlu0 %184
      %186 = vrot.lane.b32.xlu0 %v180, 127
      %v187 = vpop.permute.xlu0 %186
      %188 = vrot.lane.b32.xlu0 %v182, 127
      %v189 = vpop.permute.xlu0 %188
      %vm190 = vcmask 1039360
      %v191 = vsel %vm190, %v185, %v187
      %v192 = vsel %vm190, %v187, %v189
      %vm193 = vcmask 31744
      %v195 = vsel %vm193, %v175, 0
      %vm197 = vcmask 1041408
      %v199 = vsel %vm197, %v191, 0
      %v202 = vsel %vm197, %v192, 0
      %v205 = vsel %vm197, %v189, 0
      %207 = vmatpush.bf16.msra.mxu0 0
      %208 = vmatpush.bf16.msra.mxu0 0
      %209 = vmatpush.bf16.msra.mxu0 0
      %210 = vmatpush.bf16.msra.mxu0 0
      %211 = vmatpush.bf16.msra.mxu0 0
      %212 = vmatpush.bf16.msra.mxu0 0
      %213 = vmatpush.bf16.msra.mxu0 0
      %214 = vmatpush.bf16.msra.mxu0 %v199
      %215 = vmatmul.bf16.gmra.mxu0 %v195
      %v216 = vpop.f32.mrf.mxu0
      %v217 = vadd.f32 0.0, %v216
      %v218 = vpop.f32.mrf.mxu0
      %219 = vdwg.mxu0
      %220 = vmatpush.bf16.msra.mxu0 0
      %221 = vmatpush.bf16.msra.mxu0 0
      %222 = vmatpush.bf16.msra.mxu0 0
      %223 = vmatpush.bf16.msra.mxu0 0
      %224 = vmatpush.bf16.msra.mxu0 0
      %225 = vmatpush.bf16.msra.mxu0 0
      %226 = vmatpush.bf16.msra.mxu0 0
      %227 = vmatpush.bf16.msra.mxu0 %v202
      %228 = vmatmul.bf16.gmra.mxu0 %v195
      %v229 = vpop.f32.mrf.mxu0
      %v230 = vadd.f32 0.0, %v229
      %v231 = vpop.f32.mrf.mxu0
      %232 = vdwg.mxu0
      %233 = vmatpush.bf16.msra.mxu0 0
      %234 = vmatpush.bf16.msra.mxu0 0
      %235 = vmatpush.bf16.msra.mxu0 0
      %236 = vmatpush.bf16.msra.mxu0 0
      %237 = vmatpush.bf16.msra.mxu0 0
      %238 = vmatpush.bf16.msra.mxu0 0
      %239 = vmatpush.bf16.msra.mxu0 0
      %240 = vmatpush.bf16.msra.mxu0 %v205
      %241 = vmatmul.bf16.gmra.mxu0 %v195
      %v242 = vpop.f32.mrf.mxu0
      %v243 = vadd.f32 0.0, %v242
      %v244 = vpop.f32.mrf.mxu0
      %245 = vdwg.mxu0
      %246 = vst [vmem:[#allocation1] ss:$4 sm:$0xff] %v172
      %v247 = vld.sshfl [vmem:[#allocation1] sm:$0xff pattern:$0x73625140]
      %v248 = vld.sshfl [vmem:[#allocation1 + $0x8] sm:$0xff pattern:$0x73625140]
      %v249 = vld.sshfl [vmem:[#allocation1 + $0x10] sm:$0xff pattern:$0x73625140]
      %v251 = vsel %vm193, %v173, 0
      %v253 = vsel %vm197, %v247, 0
      %v255 = vsel %vm197, %v248, 0
      %v257 = vsel %vm197, %v249, 0
      %259 = vmatpush.bf16.msra.mxu0 0
      %260 = vmatpush.bf16.msra.mxu0 0
      %261 = vmatpush.bf16.msra.mxu0 0
      %262 = vmatpush.bf16.msra.mxu0 0
      %263 = vmatpush.bf16.msra.mxu0 0
      %264 = vmatpush.bf16.msra.mxu0 0
      %265 = vmatpush.bf16.msra.mxu0 0
      %266 = vmatpush.bf16.msra.mxu0 %v253
      %267 = vmatmul.bf16.gmra.mxu0 %v251
      %v268 = vpop.f32.mrf.mxu0
      %v269 = vadd.f32 %v217, %v268
      %v270 = vpop.f32.mrf.mxu0
      %271 = vdwg.mxu0
      %272 = vmatpush.bf16.msra.mxu0 0
      %273 = vmatpush.bf16.msra.mxu0 0
      %274 = vmatpush.bf16.msra.mxu0 0
      %275 = vmatpush.bf16.msra.mxu0 0
      %276 = vmatpush.bf16.msra.mxu0 0
      %277 = vmatpush.bf16.msra.mxu0 0
      %278 = vmatpush.bf16.msra.mxu0 0
      %279 = vmatpush.bf16.msra.mxu0 %v255
      %280 = vmatmul.bf16.gmra.mxu0 %v251
      %v281 = vpop.f32.mrf.mxu0
      %v282 = vadd.f32 %v230, %v281
      %v283 = vpop.f32.mrf.mxu0
      %284 = vdwg.mxu0
      %285 = vmatpush.bf16.msra.mxu0 0
      %286 = vmatpush.bf16.msra.mxu0 0
      %287 = vmatpush.bf16.msra.mxu0 0
      %288 = vmatpush.bf16.msra.mxu0 0
      %289 = vmatpush.bf16.msra.mxu0 0
      %290 = vmatpush.bf16.msra.mxu0 0
      %291 = vmatpush.bf16.msra.mxu0 0
      %292 = vmatpush.bf16.msra.mxu0 %v257
      %293 = vmatmul.bf16.gmra.mxu0 %v251
      %v294 = vpop.f32.mrf.mxu0
      %v295 = vadd.f32 %v243, %v294
      %v296 = vpop.f32.mrf.mxu0
      %297 = vdwg.mxu0
      %s298 = scalar_lea.vmem %s1, 8
      %v299 = vld [vmem:[%s298] sm:$0xf]
      %300 = vst [vmem:[#allocation1] ss:$4 sm:$0xff] %v172
      %v301 = vld.sshfl [vmem:[#allocation1] sm:$0xff pattern:$0x73625140]
      %v303 = vld.sshfl [vmem:[#allocation1 + $0x8] sm:$0xff pattern:$0x73625140]
      %v305 = vld.sshfl [vmem:[#allocation1 + $0x10] sm:$0xff pattern:$0x73625140]
      %307 = vrot.lane.b32.xlu0 %v301, 126
      %v308 = vpop.permute.xlu0 %307
      %309 = vrot.lane.b32.xlu0 %v303, 126
      %v310 = vpop.permute.xlu0 %309
      %311 = vrot.lane.b32.xlu0 %v305, 126
      %v312 = vpop.permute.xlu0 %311
      %vm313 = vcmask 1031168
      %v314 = vsel %vm313, %v308, %v310
      %v315 = vsel %vm313, %v310, %v312
      %v317 = vsel %vm193, %v299, 0
      %v320 = vsel %vm197, %v314, 0
      %v323 = vsel %vm197, %v315, 0
      %v326 = vsel %vm197, %v312, 0
      %328 = vmatpush.bf16.msra.mxu0 0
      %329 = vmatpush.bf16.msra.mxu0 0
      %330 = vmatpush.bf16.msra.mxu0 0
      %331 = vmatpush.bf16.msra.mxu0 0
      %332 = vmatpush.bf16.msra.mxu0 0
      %333 = vmatpush.bf16.msra.mxu0 0
      %334 = vmatpush.bf16.msra.mxu0 0
      %335 = vmatpush.bf16.msra.mxu0 %v320
      %336 = vmatmul.bf16.gmra.mxu0 %v317
      %v337 = vpop.f32.mrf.mxu0
      %v338 = vadd.f32 0.0, %v337
      %v339 = vpop.f32.mrf.mxu0
      %340 = vdwg.mxu0
      %341 = vmatpush.bf16.msra.mxu0 0
      %342 = vmatpush.bf16.msra.mxu0 0
      %343 = vmatpush.bf16.msra.mxu0 0
      %344 = vmatpush.bf16.msra.mxu0 0
      %345 = vmatpush.bf16.msra.mxu0 0
      %346 = vmatpush.bf16.msra.mxu0 0
      %347 = vmatpush.bf16.msra.mxu0 0
      %348 = vmatpush.bf16.msra.mxu0 %v323
      %349 = vmatmul.bf16.gmra.mxu0 %v317
      %v350 = vpop.f32.mrf.mxu0
      %v351 = vadd.f32 0.0, %v350
      %v352 = vpop.f32.mrf.mxu0
      %353 = vdwg.mxu0
      %354 = vmatpush.bf16.msra.mxu0 0
      %355 = vmatpush.bf16.msra.mxu0 0
      %356 = vmatpush.bf16.msra.mxu0 0
      %357 = vmatpush.bf16.msra.mxu0 0
      %358 = vmatpush.bf16.msra.mxu0 0
      %359 = vmatpush.bf16.msra.mxu0 0
      %360 = vmatpush.bf16.msra.mxu0 0
      %361 = vmatpush.bf16.msra.mxu0 %v326
      %362 = vmatmul.bf16.gmra.mxu0 %v317
      %v363 = vpop.f32.mrf.mxu0
      %v364 = vadd.f32 0.0, %v363
      %v365 = vpop.f32.mrf.mxu0
      %366 = vdwg.mxu0
      %v367 = vadd.f32 %v269, %v338
      %v368 = vadd.f32 %v282, %v351
      %v369 = vadd.f32 %v295, %v364
      %s370 = scalar_lea.vmem %s1, 12
      %v371 = vld [vmem:[%s370] sm:$0xf]
      %372 = vst [vmem:[#allocation1] ss:$4 sm:$0xff] %v172
      %v373 = vld.sshfl [vmem:[#allocation1] sm:$0xff pattern:$0x73625140]
      %v375 = vld.sshfl [vmem:[#allocation1 + $0x8] sm:$0xff pattern:$0x73625140]
      %v377 = vld.sshfl [vmem:[#allocation1 + $0x10] sm:$0xff pattern:$0x73625140]
      %379 = vrot.lane.b32.xlu0 %v373, 110
      %v380 = vpop.permute.xlu0 %379
      %381 = vrot.lane.b32.xlu0 %v375, 110
      %v382 = vpop.permute.xlu0 %381
      %383 = vrot.lane.b32.xlu0 %v377, 110
      %v384 = vpop.permute.xlu0 %383
      %vm385 = vcmask 900096
      %v386 = vsel %vm385, %v380, %v382
      %v387 = vsel %vm385, %v382, %v384
      %v389 = vsel %vm193, %v371, 0
      %v392 = vsel %vm197, %v386, 0
      %v395 = vsel %vm197, %v387, 0
      %v398 = vsel %vm197, %v384, 0
      %400 = vmatpush.bf16.msra.mxu0 0
      %401 = vmatpush.bf16.msra.mxu0 0
      %402 = vmatpush.bf16.msra.mxu0 0
      %403 = vmatpush.bf16.msra.mxu0 0
      %404 = vmatpush.bf16.msra.mxu0 0
      %405 = vmatpush.bf16.msra.mxu0 0
      %406 = vmatpush.bf16.msra.mxu0 0
      %407 = vmatpush.bf16.msra.mxu0 %v392
      %408 = vmatmul.bf16.gmra.mxu0 %v389
      %v409 = vpop.f32.mrf.mxu0
      %v410 = vadd.f32 0.0, %v409
      %v411 = vpop.f32.mrf.mxu0
      %412 = vdwg.mxu0
      %413 = vmatpush.bf16.msra.mxu0 0
      %414 = vmatpush.bf16.msra.mxu0 0
      %415 = vmatpush.bf16.msra.mxu0 0
      %416 = vmatpush.bf16.msra.mxu0 0
      %417 = vmatpush.bf16.msra.mxu0 0
      %418 = vmatpush.bf16.msra.mxu0 0
      %419 = vmatpush.bf16.msra.mxu0 0
      %420 = vmatpush.bf16.msra.mxu0 %v395
      %421 = vmatmul.bf16.gmra.mxu0 %v389
      %v422 = vpop.f32.mrf.mxu0
      %v423 = vadd.f32 0.0, %v422
      %v424 = vpop.f32.mrf.mxu0
      %425 = vdwg.mxu0
      %426 = vmatpush.bf16.msra.mxu0 0
      %427 = vmatpush.bf16.msra.mxu0 0
      %428 = vmatpush.bf16.msra.mxu0 0
      %429 = vmatpush.bf16.msra.mxu0 0
      %430 = vmatpush.bf16.msra.mxu0 0
      %431 = vmatpush.bf16.msra.mxu0 0
      %432 = vmatpush.bf16.msra.mxu0 0
      %433 = vmatpush.bf16.msra.mxu0 %v398
      %434 = vmatmul.bf16.gmra.mxu0 %v389
      %v435 = vpop.f32.mrf.mxu0
      %v436 = vadd.f32 0.0, %v435
      %v437 = vpop.f32.mrf.mxu0
      %438 = vdwg.mxu0
      %v439 = vadd.f32 %v367, %v410
      %v440 = vadd.f32 %v368, %v423
      %v441 = vadd.f32 %v369, %v436
      %s442 = scalar_lea.vmem %s1, 16
      %v443 = vld [vmem:[%s442] sm:$0xf]
      %444 = vst [vmem:[#allocation1] ss:$4 sm:$0xff] %v172
      %v445 = vld.sshfl [vmem:[#allocation1] sm:$0xff pattern:$0x73625140]
      %v447 = vld.sshfl [vmem:[#allocation1 + $0x8] sm:$0xff pattern:$0x73625140]
      %v449 = vld.sshfl [vmem:[#allocation1 + $0x10] sm:$0xff pattern:$0x73625140]
      %451 = vrot.lane.b32.xlu0 %v445, 109
      %v452 = vpop.permute.xlu0 %451
      %453 = vrot.lane.b32.xlu0 %v447, 109
      %v454 = vpop.permute.xlu0 %453
      %455 = vrot.lane.b32.xlu0 %v449, 109
      %v456 = vpop.permute.xlu0 %455
      %vm457 = vcmask 891904
      %v458 = vsel %vm457, %v452, %v454
      %v459 = vsel %vm457, %v454, %v456
      %v461 = vsel %vm193, %v443, 0
      %v464 = vsel %vm197, %v458, 0
      %v467 = vsel %vm197, %v459, 0
      %v470 = vsel %vm197, %v456, 0
      %472 = vmatpush.bf16.msra.mxu0 0
      %473 = vmatpush.bf16.msra.mxu0 0
      %474 = vmatpush.bf16.msra.mxu0 0
      %475 = vmatpush.bf16.msra.mxu0 0
      %476 = vmatpush.bf16.msra.mxu0 0
      %477 = vmatpush.bf16.msra.mxu0 0
      %478 = vmatpush.bf16.msra.mxu0 0
      %479 = vmatpush.bf16.msra.mxu0 %v464
      %480 = vmatmul.bf16.gmra.mxu0 %v461
      %v481 = vpop.f32.mrf.mxu0
      %v482 = vadd.f32 0.0, %v481
      %v483 = vpop.f32.mrf.mxu0
      %484 = vdwg.mxu0
      %485 = vmatpush.bf16.msra.mxu0 0
      %486 = vmatpush.bf16.msra.mxu0 0
      %487 = vmatpush.bf16.msra.mxu0 0
      %488 = vmatpush.bf16.msra.mxu0 0
      %489 = vmatpush.bf16.msra.mxu0 0
      %490 = vmatpush.bf16.msra.mxu0 0
      %491 = vmatpush.bf16.msra.mxu0 0
      %492 = vmatpush.bf16.msra.mxu0 %v467
      %493 = vmatmul.bf16.gmra.mxu0 %v461
      %v494 = vpop.f32.mrf.mxu0
      %v495 = vadd.f32 0.0, %v494
      %v496 = vpop.f32.mrf.mxu0
      %497 = vdwg.mxu0
      %498 = vmatpush.bf16.msra.mxu0 0
      %499 = vmatpush.bf16.msra.mxu0 0
      %500 = vmatpush.bf16.msra.mxu0 0
      %501 = vmatpush.bf16.msra.mxu0 0
      %502 = vmatpush.bf16.msra.mxu0 0
      %503 = vmatpush.bf16.msra.mxu0 0
      %504 = vmatpush.bf16.msra.mxu0 0
      %505 = vmatpush.bf16.msra.mxu0 %v470
      %506 = vmatmul.bf16.gmra.mxu0 %v461
      %v507 = vpop.f32.mrf.mxu0
      %v508 = vadd.f32 0.0, %v507
      %v509 = vpop.f32.mrf.mxu0
      %510 = vdwg.mxu0
      %v511 = vadd.f32 %v439, %v482
      %v512 = vadd.f32 %v440, %v495
      %v513 = vadd.f32 %v441, %v508
      %s514 = scalar_lea.vmem %s1, 20
      %v515 = vld [vmem:[%s514] sm:$0xf]
      %516 = vst [vmem:[#allocation1] ss:$4 sm:$0xff] %v172
      %v517 = vld.sshfl [vmem:[#allocation1] sm:$0xff pattern:$0x73625140]
      %v519 = vld.sshfl [vmem:[#allocation1 + $0x8] sm:$0xff pattern:$0x73625140]
      %v521 = vld.sshfl [vmem:[#allocation1 + $0x10] sm:$0xff pattern:$0x73625140]
      %523 = vrot.lane.b32.xlu0 %v517, 108
      %v524 = vpop.permute.xlu0 %523
      %525 = vrot.lane.b32.xlu0 %v519, 108
      %v526 = vpop.permute.xlu0 %525
      %527 = vrot.lane.b32.xlu0 %v521, 108
      %v528 = vpop.permute.xlu0 %527
      %vm529 = vcmask 883712
      %v530 = vsel %vm529, %v524, %v526
      %v531 = vsel %vm529, %v526, %v528
      %v533 = vsel %vm193, %v515, 0
      %v536 = vsel %vm197, %v530, 0
      %v539 = vsel %vm197, %v531, 0
      %v542 = vsel %vm197, %v528, 0
      %544 = vmatpush.bf16.msra.mxu0 0
      %545 = vmatpush.bf16.msra.mxu0 0
      %546 = vmatpush.bf16.msra.mxu0 0
      %547 = vmatpush.bf16.msra.mxu0 0
      %548 = vmatpush.bf16.msra.mxu0 0
      %549 = vmatpush.bf16.msra.mxu0 0
      %550 = vmatpush.bf16.msra.mxu0 0
      %551 = vmatpush.bf16.msra.mxu0 %v536
      %552 = vmatmul.bf16.gmra.mxu0 %v533
      %v553 = vpop.f32.mrf.mxu0
      %v554 = vadd.f32 0.0, %v553
      %v555 = vpop.f32.mrf.mxu0
      %556 = vdwg.mxu0
      %557 = vmatpush.bf16.msra.mxu0 0
      %558 = vmatpush.bf16.msra.mxu0 0
      %559 = vmatpush.bf16.msra.mxu0 0
      %560 = vmatpush.bf16.msra.mxu0 0
      %561 = vmatpush.bf16.msra.mxu0 0
      %562 = vmatpush.bf16.msra.mxu0 0
      %563 = vmatpush.bf16.msra.mxu0 0
      %564 = vmatpush.bf16.msra.mxu0 %v539
      %565 = vmatmul.bf16.gmra.mxu0 %v533
      %v566 = vpop.f32.mrf.mxu0
      %v567 = vadd.f32 0.0, %v566
      %v568 = vpop.f32.mrf.mxu0
      %569 = vdwg.mxu0
      %570 = vmatpush.bf16.msra.mxu0 0
      %571 = vmatpush.bf16.msra.mxu0 0
      %572 = vmatpush.bf16.msra.mxu0 0
      %573 = vmatpush.bf16.msra.mxu0 0
      %574 = vmatpush.bf16.msra.mxu0 0
      %575 = vmatpush.bf16.msra.mxu0 0
      %576 = vmatpush.bf16.msra.mxu0 0
      %577 = vmatpush.bf16.msra.mxu0 %v542
      %578 = vmatmul.bf16.gmra.mxu0 %v533
      %v579 = vpop.f32.mrf.mxu0
      %v580 = vadd.f32 0.0, %v579
      %v581 = vpop.f32.mrf.mxu0
      %582 = vdwg.mxu0
      %v583 = vadd.f32 %v511, %v554
      %v584 = vadd.f32 %v512, %v567
      %v585 = vadd.f32 %v513, %v580
      %s586 = scalar_lea.vmem %s1, 24
      %v587 = vld [vmem:[%s586] sm:$0xf]
      %588 = vst [vmem:[#allocation1] ss:$4 sm:$0xff] %v172
      %v589 = vld.sshfl [vmem:[#allocation1] sm:$0xff pattern:$0x73625140]
      %v591 = vld.sshfl [vmem:[#allocation1 + $0x8] sm:$0xff pattern:$0x73625140]
      %v593 = vld.sshfl [vmem:[#allocation1 + $0x10] sm:$0xff pattern:$0x73625140]
      %595 = vrot.lane.b32.xlu0 %v589, 92
      %v596 = vpop.permute.xlu0 %595
      %597 = vrot.lane.b32.xlu0 %v591, 92
      %v598 = vpop.permute.xlu0 %597
      %599 = vrot.lane.b32.xlu0 %v593, 92
      %v600 = vpop.permute.xlu0 %599
      %vm601 = vcmask 752640
      %v602 = vsel %vm601, %v596, %v598
      %v603 = vsel %vm601, %v598, %v600
      %v605 = vsel %vm193, %v587, 0
      %v608 = vsel %vm197, %v602, 0
      %v611 = vsel %vm197, %v603, 0
      %v614 = vsel %vm197, %v600, 0
      %616 = vmatpush.bf16.msra.mxu0 0
      %617 = vmatpush.bf16.msra.mxu0 0
      %618 = vmatpush.bf16.msra.mxu0 0
      %619 = vmatpush.bf16.msra.mxu0 0
      %620 = vmatpush.bf16.msra.mxu0 0
      %621 = vmatpush.bf16.msra.mxu0 0
      %622 = vmatpush.bf16.msra.mxu0 0
      %623 = vmatpush.bf16.msra.mxu0 %v608
      %624 = vmatmul.bf16.gmra.mxu0 %v605
      %v625 = vpop.f32.mrf.mxu0
      %v626 = vadd.f32 0.0, %v625
      %v627 = vpop.f32.mrf.mxu0
      %628 = vdwg.mxu0
      %629 = vmatpush.bf16.msra.mxu0 0
      %630 = vmatpush.bf16.msra.mxu0 0
      %631 = vmatpush.bf16.msra.mxu0 0
      %632 = vmatpush.bf16.msra.mxu0 0
      %633 = vmatpush.bf16.msra.mxu0 0
      %634 = vmatpush.bf16.msra.mxu0 0
      %635 = vmatpush.bf16.msra.mxu0 0
      %636 = vmatpush.bf16.msra.mxu0 %v611
      %637 = vmatmul.bf16.gmra.mxu0 %v605
      %v638 = vpop.f32.mrf.mxu0
      %v639 = vadd.f32 0.0, %v638
      %v640 = vpop.f32.mrf.mxu0
      %641 = vdwg.mxu0
      %642 = vmatpush.bf16.msra.mxu0 0
      %643 = vmatpush.bf16.msra.mxu0 0
      %644 = vmatpush.bf16.msra.mxu0 0
      %645 = vmatpush.bf16.msra.mxu0 0
      %646 = vmatpush.bf16.msra.mxu0 0
      %647 = vmatpush.bf16.msra.mxu0 0
      %648 = vmatpush.bf16.msra.mxu0 0
      %649 = vmatpush.bf16.msra.mxu0 %v614
      %650 = vmatmul.bf16.gmra.mxu0 %v605
      %v651 = vpop.f32.mrf.mxu0
      %v652 = vadd.f32 0.0, %v651
      %v653 = vpop.f32.mrf.mxu0
      %654 = vdwg.mxu0
      %v655 = vadd.f32 %v583, %v626
      %v656 = vadd.f32 %v584, %v639
      %v657 = vadd.f32 %v585, %v652
      %s658 = scalar_lea.vmem %s1, 28
      %v659 = vld [vmem:[%s658] sm:$0xf]
      %660 = vst [vmem:[#allocation1] ss:$4 sm:$0xff] %v172
      %v661 = vld.sshfl [vmem:[#allocation1] sm:$0xff pattern:$0x73625140]
      %v663 = vld.sshfl [vmem:[#allocation1 + $0x8] sm:$0xff pattern:$0x73625140]
      %v665 = vld.sshfl [vmem:[#allocation1 + $0x10] sm:$0xff pattern:$0x73625140]
      %667 = vrot.lane.b32.xlu0 %v661, 91
      %v668 = vpop.permute.xlu0 %667
      %669 = vrot.lane.b32.xlu0 %v663, 91
      %v670 = vpop.permute.xlu0 %669
      %671 = vrot.lane.b32.xlu0 %v665, 91
      %v672 = vpop.permute.xlu0 %671
      %vm673 = vcmask 744448
      %v674 = vsel %vm673, %v668, %v670
      %v675 = vsel %vm673, %v670, %v672
      %v677 = vsel %vm193, %v659, 0
      %v680 = vsel %vm197, %v674, 0
      %v683 = vsel %vm197, %v675, 0
      %v686 = vsel %vm197, %v672, 0
      %688 = vmatpush.bf16.msra.mxu0 0
      %689 = vmatpush.bf16.msra.mxu0 0
      %690 = vmatpush.bf16.msra.mxu0 0
      %691 = vmatpush.bf16.msra.mxu0 0
      %692 = vmatpush.bf16.msra.mxu0 0
      %693 = vmatpush.bf16.msra.mxu0 0
      %694 = vmatpush.bf16.msra.mxu0 0
      %695 = vmatpush.bf16.msra.mxu0 %v680
      %696 = vmatmul.bf16.gmra.mxu0 %v677
      %v697 = vpop.f32.mrf.mxu0
      %v698 = vadd.f32 0.0, %v697
      %v699 = vpop.f32.mrf.mxu0
      %700 = vdwg.mxu0
      %701 = vmatpush.bf16.msra.mxu0 0
      %702 = vmatpush.bf16.msra.mxu0 0
      %703 = vmatpush.bf16.msra.mxu0 0
      %704 = vmatpush.bf16.msra.mxu0 0
      %705 = vmatpush.bf16.msra.mxu0 0
      %706 = vmatpush.bf16.msra.mxu0 0
      %707 = vmatpush.bf16.msra.mxu0 0
      %708 = vmatpush.bf16.msra.mxu0 %v683
      %709 = vmatmul.bf16.gmra.mxu0 %v677
      %v710 = vpop.f32.mrf.mxu0
      %v711 = vadd.f32 0.0, %v710
      %v712 = vpop.f32.mrf.mxu0
      %713 = vdwg.mxu0
      %714 = vmatpush.bf16.msra.mxu0 0
      %715 = vmatpush.bf16.msra.mxu0 0
      %716 = vmatpush.bf16.msra.mxu0 0
      %717 = vmatpush.bf16.msra.mxu0 0
      %718 = vmatpush.bf16.msra.mxu0 0
      %719 = vmatpush.bf16.msra.mxu0 0
      %720 = vmatpush.bf16.msra.mxu0 0
      %721 = vmatpush.bf16.msra.mxu0 %v686
      %722 = vmatmul.bf16.gmra.mxu0 %v677
      %v723 = vpop.f32.mrf.mxu0
      %v724 = vadd.f32 0.0, %v723
      %v725 = vpop.f32.mrf.mxu0
      %726 = vdwg.mxu0
      %v727 = vadd.f32 %v655, %v698
      %v728 = vadd.f32 %v656, %v711
      %v729 = vadd.f32 %v657, %v724
      %s730 = scalar_lea.vmem %s1, 32
      %v731 = vld [vmem:[%s730] sm:$0xf]
      %732 = vst [vmem:[#allocation1] ss:$4 sm:$0xff] %v172
      %v733 = vld.sshfl [vmem:[#allocation1] sm:$0xff pattern:$0x73625140]
      %v735 = vld.sshfl [vmem:[#allocation1 + $0x8] sm:$0xff pattern:$0x73625140]
      %v737 = vld.sshfl [vmem:[#allocation1 + $0x10] sm:$0xff pattern:$0x73625140]
      %739 = vrot.lane.b32.xlu0 %v733, 90
      %v740 = vpop.permute.xlu0 %739
      %741 = vrot.lane.b32.xlu0 %v735, 90
      %v742 = vpop.permute.xlu0 %741
      %743 = vrot.lane.b32.xlu0 %v737, 90
      %v744 = vpop.permute.xlu0 %743
      %vm745 = vcmask 736256
      %v746 = vsel %vm745, %v740, %v742
      %v747 = vsel %vm745, %v742, %v744
      %v749 = vsel %vm193, %v731, 0
      %v752 = vsel %vm197, %v746, 0
      %v755 = vsel %vm197, %v747, 0
      %v758 = vsel %vm197, %v744, 0
      %760 = vmatpush.bf16.msra.mxu0 0
      %761 = vmatpush.bf16.msra.mxu0 0
      %762 = vmatpush.bf16.msra.mxu0 0
      %763 = vmatpush.bf16.msra.mxu0 0
      %764 = vmatpush.bf16.msra.mxu0 0
      %765 = vmatpush.bf16.msra.mxu0 0
      %766 = vmatpush.bf16.msra.mxu0 0
      %767 = vmatpush.bf16.msra.mxu0 %v752
      %768 = vmatmul.bf16.gmra.mxu0 %v749
      %v769 = vpop.f32.mrf.mxu0
      %v770 = vadd.f32 0.0, %v769
      %v771 = vpop.f32.mrf.mxu0
      %772 = vdwg.mxu0
      %773 = vmatpush.bf16.msra.mxu0 0
      %774 = vmatpush.bf16.msra.mxu0 0
      %775 = vmatpush.bf16.msra.mxu0 0
      %776 = vmatpush.bf16.msra.mxu0 0
      %777 = vmatpush.bf16.msra.mxu0 0
      %778 = vmatpush.bf16.msra.mxu0 0
      %779 = vmatpush.bf16.msra.mxu0 0
      %780 = vmatpush.bf16.msra.mxu0 %v755
      %781 = vmatmul.bf16.gmra.mxu0 %v749
      %v782 = vpop.f32.mrf.mxu0
      %v783 = vadd.f32 0.0, %v782
      %v784 = vpop.f32.mrf.mxu0
      %785 = vdwg.mxu0
      %786 = vmatpush.bf16.msra.mxu0 0
      %787 = vmatpush.bf16.msra.mxu0 0
      %788 = vmatpush.bf16.msra.mxu0 0
      %789 = vmatpush.bf16.msra.mxu0 0
      %790 = vmatpush.bf16.msra.mxu0 0
      %791 = vmatpush.bf16.msra.mxu0 0
      %792 = vmatpush.bf16.msra.mxu0 0
      %793 = vmatpush.bf16.msra.mxu0 %v758
      %794 = vmatmul.bf16.gmra.mxu0 %v749
      %v795 = vpop.f32.mrf.mxu0
      %v796 = vadd.f32 0.0, %v795
      %v797 = vpop.f32.mrf.mxu0
      %798 = vdwg.mxu0
      %v799 = vadd.f32 %v727, %v770
      %v800 = vadd.f32 %v728, %v783
      %v801 = vadd.f32 %v729, %v796
      %v802 = vld [vmem:[%s2] sm:$0xff]
      %804 = vset.pattern.permute.xlu0 0
      %805 = vperm.xlu0 %804, %v802
      %v806 = vpop.permute.xlu0 %805
      %v808 = vadd.f32 %v799, %v806
      %v809 = vadd.f32 %v800, %v806
      %v810 = vadd.f32 %v801, %v806
      %vm811 = vcmp.gt.f32.partialorder %v808, 0.0
      %vm812 = vcmp.gt.f32.partialorder %v809, 0.0
      %vm813 = vcmp.gt.f32.partialorder %v810, 0.0
      %v814 = vmul.f32 %v808, 0.01
      %v815 = vmul.f32 %v809, 0.01
      %v816 = vmul.f32 %v810, 0.01
      %v817 = vsel %vm811, %v808, %v814
      %v818 = vsel %vm812, %v809, %v815
      %v819 = vsel %vm813, %v810, %v816
      %820 = vst [vmem:[%s170] sm:$0xff] %v817
      %821 = vst [vmem:[%s170 + $0x8] sm:$0xff] %v818
      %vm822 = vcmask 261120
      %823 = vst.msk [vmem:[%s170 + $0x10] sm:$0xff] %vm822, %v819
      %p824 = scmp.lt.s32.totalorder %s14, 1
      %s825 = scalar_select %p824, %s14, 1
      %s826 = smul.addr %s825, 3
      %s827 = smul.addr %s826, 8
      %s828 = scalar_lea.vmem %s3, %s827
      // Predicated region
      $region33: #{conv_block_forward.2} parent=31 // pred_check
        %p829 = pneg %p100
      $region34: #{conv_block_forward.2} parent=31 // pred_check_branch
        %831 = sbr.rel (%p829) target = $region36
      $region35: #{conv_block_forward.2} parent=31 // pred_region
        _
      $region36: #{conv_block_forward.2} parent=31 // pred_fallthru
        _
    $region32: #{conv_block_forward.2} parent=5 // pred_fallthru
      _
    %p832 = scmp.le.s32.totalorder 2, %s9
    // Predicated region
    $region37: #{conv_block_forward.2} parent=5 // pred_check
      %p833 = pneg %p832
    $region38: #{conv_block_forward.2} parent=5 // pred_check_branch
      %835 = sbr.rel (%p833) target = $region40
    $region39: #{conv_block_forward.2} parent=5 // pred_region
      %s836 = ssub.s32 %s9, 2
      // Predicated region
      $region41: #{conv_block_forward.2} parent=39 // pred_check
        %p837 = pneg %p106
      $region42: #{conv_block_forward.2} parent=39 // pred_check_branch
        %839 = sbr.rel (%p837) target = $region44
      $region43: #{conv_block_forward.2} parent=39 // pred_region
        %p840 = scmp.lt.s32.totalorder %s15, 1
        %s841 = scalar_select %p840, %s15, 1
        %s842 = smul.addr %s841, 3
        %s843 = smul.addr %s842, 8
        %s844 = scalar_lea.vmem %s3, %s843
      $region44: #{conv_block_forward.2} parent=39 // pred_fallthru
        _
    $region40: #{conv_block_forward.2} parent=5 // pred_fallthru
      _
  $region6: #{conv_block_forward.2} parent=0 // loop_footer
    %s13 = sadd.s32 1, %s9
  $region7: #{conv_block_forward.2} parent=0 // loop_footer_branch
    %8 = sbr.rel target = $region3
  $region8: #{conv_block_forward.2} parent=0 // loop_exit
    _

// kernel: conv_block_forward.3
$region0: #{conv_block_forward.3}
  #allocation0 [shape = 'u32[]', space=smem, size = 0x4, offset = 0x4, fixed_abs, tag = 'smem constant byte address 0x4 - core index']
  #allocation1 [shape = 'u32[72,128]{1,0:T(1,128)}', space=vmem, size = 0x9000, scoped, tag = 'internal scratch']
  %s0 = inlined_call_operand.vmem [shape: bf16[2,8,384], index: 0, kind: input, shape index: {}]
  %s1 = inlined_call_operand.vmem [shape: bf16[9,8,8], index: 1, kind: input, shape index: {}]
  %s2 = inlined_call_operand.vmem [shape: f32[8,1], index: 2, kind: input, shape index: {}]
  %s3 = inlined_call_operand.vmem [shape: f32[2,8,288], index: 3, kind: output, shape index: {}]
  %s4 = sld [smem:[#allocation0]]
  $region45: #{conv_block_forward.3} parent=0
    _
  %s6 = ssub.s32 1, %s4
  %s7 = scalar_select 0, %s6, %s4
  loop: start=0, step=1, limit=4
  $region2: #{conv_block_forward.3} parent=0 // loop_pre_header
    _
  $region3: #{conv_block_forward.3} parent=0 // loop_header
    %s9 = sphi 0, %s13
    %p10 = scmp.ge.s32.totalorder %s9, 4
    %s19 = sphi 0, %s21
    %s22 = sphi 0, %s19
    %s23 = sphi 0, %s22
    %s39 = sphi 0, %s23
    %s43 = sphi 0, %s43
    %s45 = sphi 0, %s43
    %s46 = sphi 0, %s45
    %s60 = sphi 0, %s46
    %s64 = sphi 0, %s64
    %s66 = sphi 0, %s64
    %s67 = sphi 0, %s66
    %s81 = sphi 0, %s67
    %s87 = sphi 0, %s89
    %s90 = sphi 0, %s87
    %s91 = sphi 0, %s90
    %s107 = sphi 0, %s91
  $region4: #{conv_block_forward.3} parent=0 // loop_header_branch
    %12 = sbr.rel (%p10) target = $region8
  $region5: #{conv_block_forward.3} parent=0 // loop_body
    %s14 = ssub.s32 %s9, 1
    %s15 = ssub.s32 %s9, 2
    %s16 = sadd.s32 %s9, 1
    %s17 = ssub.s32 %s9, %s16
    %p18 = scmp.eq.s32.totalorder %s17, 0
    %s20 = sadd.s32 %s19, 1
    %s21 = scalar_select %p18, %s19, %s20
    %p24 = pneg %p18
    %p25 = scmp.eq.s32.totalorder %s9, 1
    %p26 = por %p24, %p25
    %p27 = scmp.ne.s32.totalorder %s19, %s22
    %p28 = scmp.eq.s32.totalorder %s9, 0
    %p29 = por %p27, %p28
    %p30 = scmp.ne.s32.totalorder %s19, %s22
    %p31 = scmp.eq.s32.totalorder %s14, 1
    %p32 = por %p30, %p31
    %p33 = scmp.ne.s32.totalorder %s22, %s23
    %p34 = scmp.eq.s32.totalorder %s14, 0
    %p35 = por %p33, %p34
    %p36 = scmp.ne.s32.totalorder %s22, %s23
    %p37 = scmp.eq.s32.totalorder %s15, 1
    %p38 = por %p36, %p37
    %p40 = scmp.ne.s32.totalorder %s23, %s39
    %p41 = scmp.eq.s32.totalorder %s15, 0
    %p42 = por %p40, %p41
    %s44 = sadd.s32 %s43, 1
    %p47 = scmp.eq.s32.totalorder %s9, 1
    %p48 = scmp.ne.s32.totalorder %s43, %s45
    %p49 = scmp.eq.s32.totalorder %s9, 0
    %p50 = por %p48, %p49
    %p51 = scmp.ne.s32.totalorder %s43, %s45
    %p52 = scmp.eq.s32.totalorder %s14, 1
    %p53 = por %p51, %p52
    %p54 = scmp.ne.s32.totalorder %s45, %s46
    %p55 = scmp.eq.s32.totalorder %s14, 0
    %p56 = por %p54, %p55
    %p57 = scmp.ne.s32.totalorder %s45, %s46
    %p58 = scmp.eq.s32.totalorder %s15, 1
    %p59 = por %p57, %p58
    %p61 = scmp.ne.s32.totalorder %s46, %s60
    %p62 = scmp.eq.s32.totalorder %s15, 0
    %p63 = por %p61, %p62
    %s65 = sadd.s32 %s64, 1
    %p68 = scmp.eq.s32.totalorder %s9, 1
    %p69 = scmp.ne.s32.totalorder %s64, %s66
    %p70 = scmp.eq.s32.totalorder %s9, 0
    %p71 = por %p69, %p70
    %p72 = scmp.ne.s32.totalorder %s64, %s66
    %p73 = scmp.eq.s32.totalorder %s14, 1
    %p74 = por %p72, %p73
    %p75 = scmp.ne.s32.totalorder %s66, %s67
    %p76 = scmp.eq.s32.totalorder %s14, 0
    %p77 = por %p75, %p76
    %p78 = scmp.ne.s32.totalorder %s66, %s67
    %p79 = scmp.eq.s32.totalorder %s15, 1
    %p80 = por %p78, %p79
    %p82 = scmp.ne.s32.totalorder %s67, %s81
    %p83 = scmp.eq.s32.totalorder %s15, 0
    %p84 = por %p82, %p83
    %s85 = ssub.s32 %s9, %s16
    %p86 = scmp.eq.s32.totalorder %s85, 0
    %s88 = sadd.s32 %s87, 1
    %s89 = scalar_select %p86, %s87, %s88
    %p92 = pneg %p86
    %p93 = scmp.eq.s32.totalorder %s9, 1
    %p94 = por %p92, %p93
    %p95 = scmp.ne.s32.totalorder %s87, %s90
    %p96 = scmp.eq.s32.totalorder %s9, 0
    %p97 = por %p95, %p96
    %p98 = scmp.ne.s32.totalorder %s87, %s90
    %p99 = scmp.eq.s32.totalorder %s14, 1
    %p100 = por %p98, %p99
    %p101 = scmp.ne.s32.totalorder %s90, %s91
    %p102 = scmp.eq.s32.totalorder %s14, 0
    %p103 = por %p101, %p102
    %p104 = scmp.ne.s32.totalorder %s90, %s91
    %p105 = scmp.eq.s32.totalorder %s15, 1
    %p106 = por %p104, %p105
    %p108 = scmp.ne.s32.totalorder %s91, %s107
    %p109 = scmp.eq.s32.totalorder %s15, 0
    %p110 = por %p108, %p109
    %p111 = scmp.le.s32.totalorder 1, %s9
    %p112 = scmp.lt.s32.totalorder %s9, 3
    %p113 = pnand %p111, %p112
    %p114 = pneg %p113
    // Predicated region
    $region9: #{conv_block_forward.3} parent=5 // pred_check
      _
    $region10: #{conv_block_forward.3} parent=5 // pred_check_branch
      %116 = sbr.rel (%p113) target = $region12
    $region11: #{conv_block_forward.3} parent=5 // pred_region
      %s117 = ssub.s32 %s9, 1
      // Predicated region
      $region13: #{conv_block_forward.3} parent=11 // pred_check
        %p118 = pneg %p56
      $region14: #{conv_block_forward.3} parent=11 // pred_check_branch
        %120 = sbr.rel (%p118) target = $region16
      $region15: #{conv_block_forward.3} parent=11 // pred_region
        _
      $region16: #{conv_block_forward.3} parent=11 // pred_fallthru
        _
      // Predicated region
      $region17: #{conv_block_forward.3} parent=11 // pred_check
        %p121 = pneg %p77
      $region18: #{conv_block_forward.3} parent=11 // pred_check_branch
        %123 = sbr.rel (%p121) target = $region20
      $region19: #{conv_block_forward.3} parent=11 // pred_region
        _
      $region20: #{conv_block_forward.3} parent=11 // pred_fallthru
        _
    $region12: #{conv_block_forward.3} parent=5 // pred_fallthru
      _
    %p124 = scmp.lt.s32.totalorder %s9, 2
    // Predicated region
    $region21: #{conv_block_forward.3} parent=5 // pred_check
      %p125 = pneg %p124
    $region22: #{conv_block_forward.3} parent=5 // pred_check_branch
      %127 = sbr.rel (%p125) target = $region24
    $region23: #{conv_block_forward.3} parent=5 // pred_region
      // Predicated region
      $region25: #{conv_block_forward.3} parent=23 // pred_check
        %p128 = pneg %p29
      $region26: #{conv_block_forward.3} parent=23 // pred_check_branch
        %130 = sbr.rel (%p128) target = $region28
      $region27: #{conv_block_forward.3} parent=23 // pred_region
        %p131 = scmp.lt.s32.totalorder %s9, 1
        %s132 = scalar_select %p131, %s9, 1
        %s133 = smul.addr %s132, 3
        %s134 = smul.addr %s133, 4
        %s135 = scalar_lea.vmem %s0, %s134
      $region28: #{conv_block_forward.3} parent=23 // pred_fallthru
        _
    $region24: #{conv_block_forward.3} parent=5 // pred_fallthru
      _
    %p136 = scmp.le.s32.totalorder 1, %s9
    %p137 = scmp.lt.s32.totalorder %s9, 3
    %p138 = pnand %p136, %p137
    %p139 = pneg %p138
    // Predicated region
    $region29: #{conv_block_forward.3} parent=5 // pred_check
      _
    $region30: #{conv_block_forward.3} parent=5 // pred_check_branch
      %141 = sbr.rel (%p138) target = $region32
    $region31: #{conv_block_forward.3} parent=5 // pred_region
      %s142 = ssub.s32 %s9, 1
      %p143 = scmp.lt.s32.totalorder %s14, 1
      %s144 = scalar_select %p143, %s14, 1
      %s145 = smul.addr %s144, 3
      %s146 = smul.addr %s145, 4
      %s147 = scalar_lea.vmem %s0, %s146
      %p148 = pneg %p35
      %p149 = pneg %p32
      %p150 = pneg %p56
      %p151 = pneg %p53
      %p152 = pneg %p77
      %p153 = pneg %p74
      %p154 = pneg %p103
      %p155 = pneg %p100
      %p156 = scmp.lt.s32.totalorder %s14, 1
      %s157 = scalar_select %p156, %s14, 1
      %s158 = smul.addr %s157, 3
      %s159 = smul.addr %s158, 8
      %s160 = scalar_lea.vmem %s3, %s159
      %p161 = scmp.lt.s32.totalorder %s14, 1
      %s162 = scalar_select %p161, %s14, 1
      %s163 = smul.addr %s162, 3
      %s164 = smul.addr %s163, 4
      %s165 = scalar_lea.vmem %s0, %s164
      %p166 = scmp.lt.s32.totalorder %s14, 1
      %s167 = scalar_select %p166, %s14, 1
      %s168 = smul.addr %s167, 3
      %s169 = smul.addr %s168, 8
      %s170 = scalar_lea.vmem %s3, %s169
      %v172 = vld [vmem:[%s165] sm:$0xff]
      %v173 = vld [vmem:[%s165 + $0x8] sm:$0xf]
      %v174 = vld [vmem:[%s1] sm:$0xf]
      %s175 = scalar_lea.vmem %s1, 4
      %v176 = vld [vmem:[%s175] sm:$0xf]
      %v179 = vunpack.c.l.b16 %v172
      %v180 = vunpack.c.h.b16 %v172
      %v181 = vunpack.c.l.b16 %v173
      %v182 = vpack.c.b16 %v179, %v179
      %v183 = vpack.c.b16 %v180, %v180
      %v184 = vpack.c.b16 %v181, %v181
      %185 = vrot.lane.b32.xlu0 %v182, 127
      %v186 = vpop.permute.xlu0 %185
      %187 = vrot.lane.b32.xlu0 %v183, 127
      %v188 = vpop.permute.xlu0 %187
      %189 = vrot.lane.b32.xlu0 %v184, 127
      %v190 = vpop.permute.xlu0 %189
      %vm191 = vcmask 1039360
      %v192 = vsel %vm191, %v186, %v188
      %v193 = vsel %vm191, %v188, %v190
      %vm194 = vcmask 64512
      %v196 = vsel %vm194, %v176, 0
      %vm198 = vcmask 1043456
      %v200 = vsel %vm198, %v192, 0
      %v203 = vsel %vm198, %v193, 0
      %v206 = vsel %vm198, %v190, 0
      %208 = vmatpush.bf16.msra.mxu0 0
      %209 = vmatpush.bf16.msra.mxu0 0
      %210 = vmatpush.bf16.msra.mxu0 0
      %211 = vmatpush.bf16.msra.mxu0 0
      %212 = vmatpush.bf16.msra.mxu0 0
      %213 = vmatpush.bf16.msra.mxu0 0
      %214 = vmatpush.bf16.msra.mxu0 0
      %215 = vmatpush.bf16.msra.mxu0 %v200
      %216 = vmatmul.bf16.gmra.mxu0 %v196
      %v217 = vpop.f32.mrf.mxu0
      %v218 = vadd.f32 0.0, %v217
      %v219 = vpop.f32.mrf.mxu0
      %220 = vdwg.mxu0
      %221 = vmatpush.bf16.msra.mxu0 0
      %222 = vmatpush.bf16.msra.mxu0 0
      %223 = vmatpush.bf16.msra.mxu0 0
      %224 = vmatpush.bf16.msra.mxu0 0
      %225 = vmatpush.bf16.msra.mxu0 0
      %226 = vmatpush.bf16.msra.mxu0 0
      %227 = vmatpush.bf16.msra.mxu0 0
      %228 = vmatpush.bf16.msra.mxu0 %v203
      %229 = vmatmul.bf16.gmra.mxu0 %v196
      %v230 = vpop.f32.mrf.mxu0
      %v231 = vadd.f32 0.0, %v230
      %v232 = vpop.f32.mrf.mxu0
      %233 = vdwg.mxu0
      %234 = vmatpush.bf16.msra.mxu0 0
      %235 = vmatpush.bf16.msra.mxu0 0
      %236 = vmatpush.bf16.msra.mxu0 0
      %237 = vmatpush.bf16.msra.mxu0 0
      %238 = vmatpush.bf16.msra.mxu0 0
      %239 = vmatpush.bf16.msra.mxu0 0
      %240 = vmatpush.bf16.msra.mxu0 0
      %241 = vmatpush.bf16.msra.mxu0 %v206
      %242 = vmatmul.bf16.gmra.mxu0 %v196
      %v243 = vpop.f32.mrf.mxu0
      %v244 = vadd.f32 0.0, %v243
      %v245 = vpop.f32.mrf.mxu0
      %246 = vdwg.mxu0
      %v248 = vsel %vm194, %v174, 0
      %v251 = vsel %vm198, %v182, 0
      %v254 = vsel %vm198, %v183, 0
      %v257 = vsel %vm198, %v184, 0
      %259 = vmatpush.bf16.msra.mxu0 0
      %260 = vmatpush.bf16.msra.mxu0 0
      %261 = vmatpush.bf16.msra.mxu0 0
      %262 = vmatpush.bf16.msra.mxu0 0
      %263 = vmatpush.bf16.msra.mxu0 0
      %264 = vmatpush.bf16.msra.mxu0 0
      %265 = vmatpush.bf16.msra.mxu0 0
      %266 = vmatpush.bf16.msra.mxu0 %v251
      %267 = vmatmul.bf16.gmra.mxu0 %v248
      %v268 = vpop.f32.mrf.mxu0
      %v269 = vadd.f32 %v218, %v268
      %v270 = vpop.f32.mrf.mxu0
      %271 = vdwg.mxu0
      %272 = vmatpush.bf16.msra.mxu0 0
      %273 = vmatpush.bf16.msra.mxu0 0
      %274 = vmatpush.bf16.msra.mxu0 0
      %275 = vmatpush.bf16.msra.mxu0 0
      %276 = vmatpush.bf16.msra.mxu0 0
      %277 = vmatpush.bf16.msra.mxu0 0
      %278 = vmatpush.bf16.msra.mxu0 0
      %279 = vmatpush.bf16.msra.mxu0 %v254
      %280 = vmatmul.bf16.gmra.mxu0 %v248
      %v281 = vpop.f32.mrf.mxu0
      %v282 = vadd.f32 %v231, %v281
      %v283 = vpop.f32.mrf.mxu0
      %284 = vdwg.mxu0
      %285 = vmatpush.bf16.msra.mxu0 0
      %286 = vmatpush.bf16.msra.mxu0 0
      %287 = vmatpush.bf16.msra.mxu0 0
      %288 = vmatpush.bf16.msra.mxu0 0
      %289 = vmatpush.bf16.msra.mxu0 0
      %290 = vmatpush.bf16.msra.mxu0 0
      %291 = vmatpush.bf16.msra.mxu0 0
      %292 = vmatpush.bf16.msra.mxu0 %v257
      %293 = vmatmul.bf16.gmra.mxu0 %v248
      %v294 = vpop.f32.mrf.mxu0
      %v295 = vadd.f32 %v244, %v294
      %v296 = vpop.f32.mrf.mxu0
      %297 = vdwg.mxu0
      %s298 = scalar_lea.vmem %s1, 8
      %v299 = vld [vmem:[%s298] sm:$0xf]
      %300 = vrot.lane.b32.xlu0 %v182, 126
      %v301 = vpop.permute.xlu0 %300
      %302 = vrot.lane.b32.xlu0 %v183, 126
      %v303 = vpop.permute.xlu0 %302
      %304 = vrot.lane.b32.xlu0 %v184, 126
      %v305 = vpop.permute.xlu0 %304
      %vm306 = vcmask 1031168
      %v307 = vsel %vm306, %v301, %v303
      %v308 = vsel %vm306, %v303, %v305
      %v310 = vsel %vm194, %v299, 0
      %v313 = vsel %vm198, %v307, 0
      %v316 = vsel %vm198, %v308, 0
      %v319 = vsel %vm198, %v305, 0
      %321 = vmatpush.bf16.msra.mxu0 0
      %322 = vmatpush.bf16.msra.mxu0 0
      %323 = vmatpush.bf16.msra.mxu0 0
      %324 = vmatpush.bf16.msra.mxu0 0
      %325 = vmatpush.bf16.msra.mxu0 0
      %326 = vmatpush.bf16.msra.mxu0 0
      %327 = vmatpush.bf16.msra.mxu0 0
      %328 = vmatpush.bf16.msra.mxu0 %v313
      %329 = vmatmul.bf16.gmra.mxu0 %v310
      %v330 = vpop.f32.mrf.mxu0
      %v331 = vadd.f32 0.0, %v330
      %v332 = vpop.f32.mrf.mxu0
      %333 = vdwg.mxu0
      %334 = vmatpush.bf16.msra.mxu0 0
      %335 = vmatpush.bf16.msra.mxu0 0
      %336 = vmatpush.bf16.msra.mxu0 0
      %337 = vmatpush.bf16.msra.mxu0 0
      %338 = vmatpush.bf16.msra.mxu0 0
      %339 = vmatpush.bf16.msra.mxu0 0
      %340 = vmatpush.bf16.msra.mxu0 0
      %341 = vmatpush.bf16.msra.mxu0 %v316
      %342 = vmatmul.bf16.gmra.mxu0 %v310
      %v343 = vpop.f32.mrf.mxu0
      %v344 = vadd.f32 0.0, %v343
      %v345 = vpop.f32.mrf.mxu0
      %346 = vdwg.mxu0
      %347 = vmatpush.bf16.msra.mxu0 0
      %348 = vmatpush.bf16.msra.mxu0 0
      %349 = vmatpush.bf16.msra.mxu0 0
      %350 = vmatpush.bf16.msra.mxu0 0
      %351 = vmatpush.bf16.msra.mxu0 0
      %352 = vmatpush.bf16.msra.mxu0 0
      %353 = vmatpush.bf16.msra.mxu0 0
      %354 = vmatpush.bf16.msra.mxu0 %v319
      %355 = vmatmul.bf16.gmra.mxu0 %v310
      %v356 = vpop.f32.mrf.mxu0
      %v357 = vadd.f32 0.0, %v356
      %v358 = vpop.f32.mrf.mxu0
      %359 = vdwg.mxu0
      %v360 = vadd.f32 %v269, %v331
      %v361 = vadd.f32 %v282, %v344
      %v362 = vadd.f32 %v295, %v357
      %s363 = scalar_lea.vmem %s1, 12
      %v364 = vld [vmem:[%s363] sm:$0xf]
      %365 = vrot.lane.b32.xlu0 %v182, 110
      %v366 = vpop.permute.xlu0 %365
      %367 = vrot.lane.b32.xlu0 %v183, 110
      %v368 = vpop.permute.xlu0 %367
      %369 = vrot.lane.b32.xlu0 %v184, 110
      %v370 = vpop.permute.xlu0 %369
      %vm371 = vcmask 900096
      %v372 = vsel %vm371, %v366, %v368
      %v373 = vsel %vm371, %v368, %v370
      %v375 = vsel %vm194, %v364, 0
      %v378 = vsel %vm198, %v372, 0
      %v381 = vsel %vm198, %v373, 0
      %v384 = vsel %vm198, %v370, 0
      %386 = vmatpush.bf16.msra.mxu0 0
      %387 = vmatpush.bf16.msra.mxu0 0
      %388 = vmatpush.bf16.msra.mxu0 0
      %389 = vmatpush.bf16.msra.mxu0 0
      %390 = vmatpush.bf16.msra.mxu0 0
      %391 = vmatpush.bf16.msra.mxu0 0
      %392 = vmatpush.bf16.msra.mxu0 0
      %393 = vmatpush.bf16.msra.mxu0 %v378
      %394 = vmatmul.bf16.gmra.mxu0 %v375
      %v395 = vpop.f32.mrf.mxu0
      %v396 = vadd.f32 0.0, %v395
      %v397 = vpop.f32.mrf.mxu0
      %398 = vdwg.mxu0
      %399 = vmatpush.bf16.msra.mxu0 0
      %400 = vmatpush.bf16.msra.mxu0 0
      %401 = vmatpush.bf16.msra.mxu0 0
      %402 = vmatpush.bf16.msra.mxu0 0
      %403 = vmatpush.bf16.msra.mxu0 0
      %404 = vmatpush.bf16.msra.mxu0 0
      %405 = vmatpush.bf16.msra.mxu0 0
      %406 = vmatpush.bf16.msra.mxu0 %v381
      %407 = vmatmul.bf16.gmra.mxu0 %v375
      %v408 = vpop.f32.mrf.mxu0
      %v409 = vadd.f32 0.0, %v408
      %v410 = vpop.f32.mrf.mxu0
      %411 = vdwg.mxu0
      %412 = vmatpush.bf16.msra.mxu0 0
      %413 = vmatpush.bf16.msra.mxu0 0
      %414 = vmatpush.bf16.msra.mxu0 0
      %415 = vmatpush.bf16.msra.mxu0 0
      %416 = vmatpush.bf16.msra.mxu0 0
      %417 = vmatpush.bf16.msra.mxu0 0
      %418 = vmatpush.bf16.msra.mxu0 0
      %419 = vmatpush.bf16.msra.mxu0 %v384
      %420 = vmatmul.bf16.gmra.mxu0 %v375
      %v421 = vpop.f32.mrf.mxu0
      %v422 = vadd.f32 0.0, %v421
      %v423 = vpop.f32.mrf.mxu0
      %424 = vdwg.mxu0
      %v425 = vadd.f32 %v360, %v396
      %v426 = vadd.f32 %v361, %v409
      %v427 = vadd.f32 %v362, %v422
      %s428 = scalar_lea.vmem %s1, 16
      %v429 = vld [vmem:[%s428] sm:$0xf]
      %430 = vrot.lane.b32.xlu0 %v182, 109
      %v431 = vpop.permute.xlu0 %430
      %432 = vrot.lane.b32.xlu0 %v183, 109
      %v433 = vpop.permute.xlu0 %432
      %434 = vrot.lane.b32.xlu0 %v184, 109
      %v435 = vpop.permute.xlu0 %434
      %vm436 = vcmask 891904
      %v437 = vsel %vm436, %v431, %v433
      %v438 = vsel %vm436, %v433, %v435
      %v440 = vsel %vm194, %v429, 0
      %v443 = vsel %vm198, %v437, 0
      %v446 = vsel %vm198, %v438, 0
      %v449 = vsel %vm198, %v435, 0
      %451 = vmatpush.bf16.msra.mxu0 0
      %452 = vmatpush.bf16.msra.mxu0 0
      %453 = vmatpush.bf16.msra.mxu0 0
      %454 = vmatpush.bf16.msra.mxu0 0
      %455 = vmatpush.bf16.msra.mxu0 0
      %456 = vmatpush.bf16.msra.mxu0 0
      %457 = vmatpush.bf16.msra.mxu0 0
      %458 = vmatpush.bf16.msra.mxu0 %v443
      %459 = vmatmul.bf16.gmra.mxu0 %v440
      %v460 = vpop.f32.mrf.mxu0
      %v461 = vadd.f32 0.0, %v460
      %v462 = vpop.f32.mrf.mxu0
      %463 = vdwg.mxu0
      %464 = vmatpush.bf16.msra.mxu0 0
      %465 = vmatpush.bf16.msra.mxu0 0
      %466 = vmatpush.bf16.msra.mxu0 0
      %467 = vmatpush.bf16.msra.mxu0 0
      %468 = vmatpush.bf16.msra.mxu0 0
      %469 = vmatpush.bf16.msra.mxu0 0
      %470 = vmatpush.bf16.msra.mxu0 0
      %471 = vmatpush.bf16.msra.mxu0 %v446
      %472 = vmatmul.bf16.gmra.mxu0 %v440
      %v473 = vpop.f32.mrf.mxu0
      %v474 = vadd.f32 0.0, %v473
      %v475 = vpop.f32.mrf.mxu0
      %476 = vdwg.mxu0
      %477 = vmatpush.bf16.msra.mxu0 0
      %478 = vmatpush.bf16.msra.mxu0 0
      %479 = vmatpush.bf16.msra.mxu0 0
      %480 = vmatpush.bf16.msra.mxu0 0
      %481 = vmatpush.bf16.msra.mxu0 0
      %482 = vmatpush.bf16.msra.mxu0 0
      %483 = vmatpush.bf16.msra.mxu0 0
      %484 = vmatpush.bf16.msra.mxu0 %v449
      %485 = vmatmul.bf16.gmra.mxu0 %v440
      %v486 = vpop.f32.mrf.mxu0
      %v487 = vadd.f32 0.0, %v486
      %v488 = vpop.f32.mrf.mxu0
      %489 = vdwg.mxu0
      %v490 = vadd.f32 %v425, %v461
      %v491 = vadd.f32 %v426, %v474
      %v492 = vadd.f32 %v427, %v487
      %s493 = scalar_lea.vmem %s1, 20
      %v494 = vld [vmem:[%s493] sm:$0xf]
      %495 = vrot.lane.b32.xlu0 %v182, 108
      %v496 = vpop.permute.xlu0 %495
      %497 = vrot.lane.b32.xlu0 %v183, 108
      %v498 = vpop.permute.xlu0 %497
      %499 = vrot.lane.b32.xlu0 %v184, 108
      %v500 = vpop.permute.xlu0 %499
      %vm501 = vcmask 883712
      %v502 = vsel %vm501, %v496, %v498
      %v503 = vsel %vm501, %v498, %v500
      %v505 = vsel %vm194, %v494, 0
      %v508 = vsel %vm198, %v502, 0
      %v511 = vsel %vm198, %v503, 0
      %v514 = vsel %vm198, %v500, 0
      %516 = vmatpush.bf16.msra.mxu0 0
      %517 = vmatpush.bf16.msra.mxu0 0
      %518 = vmatpush.bf16.msra.mxu0 0
      %519 = vmatpush.bf16.msra.mxu0 0
      %520 = vmatpush.bf16.msra.mxu0 0
      %521 = vmatpush.bf16.msra.mxu0 0
      %522 = vmatpush.bf16.msra.mxu0 0
      %523 = vmatpush.bf16.msra.mxu0 %v508
      %524 = vmatmul.bf16.gmra.mxu0 %v505
      %v525 = vpop.f32.mrf.mxu0
      %v526 = vadd.f32 0.0, %v525
      %v527 = vpop.f32.mrf.mxu0
      %528 = vdwg.mxu0
      %529 = vmatpush.bf16.msra.mxu0 0
      %530 = vmatpush.bf16.msra.mxu0 0
      %531 = vmatpush.bf16.msra.mxu0 0
      %532 = vmatpush.bf16.msra.mxu0 0
      %533 = vmatpush.bf16.msra.mxu0 0
      %534 = vmatpush.bf16.msra.mxu0 0
      %535 = vmatpush.bf16.msra.mxu0 0
      %536 = vmatpush.bf16.msra.mxu0 %v511
      %537 = vmatmul.bf16.gmra.mxu0 %v505
      %v538 = vpop.f32.mrf.mxu0
      %v539 = vadd.f32 0.0, %v538
      %v540 = vpop.f32.mrf.mxu0
      %541 = vdwg.mxu0
      %542 = vmatpush.bf16.msra.mxu0 0
      %543 = vmatpush.bf16.msra.mxu0 0
      %544 = vmatpush.bf16.msra.mxu0 0
      %545 = vmatpush.bf16.msra.mxu0 0
      %546 = vmatpush.bf16.msra.mxu0 0
      %547 = vmatpush.bf16.msra.mxu0 0
      %548 = vmatpush.bf16.msra.mxu0 0
      %549 = vmatpush.bf16.msra.mxu0 %v514
      %550 = vmatmul.bf16.gmra.mxu0 %v505
      %v551 = vpop.f32.mrf.mxu0
      %v552 = vadd.f32 0.0, %v551
      %v553 = vpop.f32.mrf.mxu0
      %554 = vdwg.mxu0
      %v555 = vadd.f32 %v490, %v526
      %v556 = vadd.f32 %v491, %v539
      %v557 = vadd.f32 %v492, %v552
      %s558 = scalar_lea.vmem %s1, 24
      %v559 = vld [vmem:[%s558] sm:$0xf]
      %560 = vrot.lane.b32.xlu0 %v182, 92
      %v561 = vpop.permute.xlu0 %560
      %562 = vrot.lane.b32.xlu0 %v183, 92
      %v563 = vpop.permute.xlu0 %562
      %564 = vrot.lane.b32.xlu0 %v184, 92
      %v565 = vpop.permute.xlu0 %564
      %vm566 = vcmask 752640
      %v567 = vsel %vm566, %v561, %v563
      %v568 = vsel %vm566, %v563, %v565
      %v570 = vsel %vm194, %v559, 0
      %v573 = vsel %vm198, %v567, 0
      %v576 = vsel %vm198, %v568, 0
      %v579 = vsel %vm198, %v565, 0
      %581 = vmatpush.bf16.msra.mxu0 0
      %582 = vmatpush.bf16.msra.mxu0 0
      %583 = vmatpush.bf16.msra.mxu0 0
      %584 = vmatpush.bf16.msra.mxu0 0
      %585 = vmatpush.bf16.msra.mxu0 0
      %586 = vmatpush.bf16.msra.mxu0 0
      %587 = vmatpush.bf16.msra.mxu0 0
      %588 = vmatpush.bf16.msra.mxu0 %v573
      %589 = vmatmul.bf16.gmra.mxu0 %v570
      %v590 = vpop.f32.mrf.mxu0
      %v591 = vadd.f32 0.0, %v590
      %v592 = vpop.f32.mrf.mxu0
      %593 = vdwg.mxu0
      %594 = vmatpush.bf16.msra.mxu0 0
      %595 = vmatpush.bf16.msra.mxu0 0
      %596 = vmatpush.bf16.msra.mxu0 0
      %597 = vmatpush.bf16.msra.mxu0 0
      %598 = vmatpush.bf16.msra.mxu0 0
      %599 = vmatpush.bf16.msra.mxu0 0
      %600 = vmatpush.bf16.msra.mxu0 0
      %601 = vmatpush.bf16.msra.mxu0 %v576
      %602 = vmatmul.bf16.gmra.mxu0 %v570
      %v603 = vpop.f32.mrf.mxu0
      %v604 = vadd.f32 0.0, %v603
      %v605 = vpop.f32.mrf.mxu0
      %606 = vdwg.mxu0
      %607 = vmatpush.bf16.msra.mxu0 0
      %608 = vmatpush.bf16.msra.mxu0 0
      %609 = vmatpush.bf16.msra.mxu0 0
      %610 = vmatpush.bf16.msra.mxu0 0
      %611 = vmatpush.bf16.msra.mxu0 0
      %612 = vmatpush.bf16.msra.mxu0 0
      %613 = vmatpush.bf16.msra.mxu0 0
      %614 = vmatpush.bf16.msra.mxu0 %v579
      %615 = vmatmul.bf16.gmra.mxu0 %v570
      %v616 = vpop.f32.mrf.mxu0
      %v617 = vadd.f32 0.0, %v616
      %v618 = vpop.f32.mrf.mxu0
      %619 = vdwg.mxu0
      %v620 = vadd.f32 %v555, %v591
      %v621 = vadd.f32 %v556, %v604
      %v622 = vadd.f32 %v557, %v617
      %s623 = scalar_lea.vmem %s1, 28
      %v624 = vld [vmem:[%s623] sm:$0xf]
      %625 = vrot.lane.b32.xlu0 %v182, 91
      %v626 = vpop.permute.xlu0 %625
      %627 = vrot.lane.b32.xlu0 %v183, 91
      %v628 = vpop.permute.xlu0 %627
      %629 = vrot.lane.b32.xlu0 %v184, 91
      %v630 = vpop.permute.xlu0 %629
      %vm631 = vcmask 744448
      %v632 = vsel %vm631, %v626, %v628
      %v633 = vsel %vm631, %v628, %v630
      %v635 = vsel %vm194, %v624, 0
      %v638 = vsel %vm198, %v632, 0
      %v641 = vsel %vm198, %v633, 0
      %v644 = vsel %vm198, %v630, 0
      %646 = vmatpush.bf16.msra.mxu0 0
      %647 = vmatpush.bf16.msra.mxu0 0
      %648 = vmatpush.bf16.msra.mxu0 0
      %649 = vmatpush.bf16.msra.mxu0 0
      %650 = vmatpush.bf16.msra.mxu0 0
      %651 = vmatpush.bf16.msra.mxu0 0
      %652 = vmatpush.bf16.msra.mxu0 0
      %653 = vmatpush.bf16.msra.mxu0 %v638
      %654 = vmatmul.bf16.gmra.mxu0 %v635
      %v655 = vpop.f32.mrf.mxu0
      %v656 = vadd.f32 0.0, %v655
      %v657 = vpop.f32.mrf.mxu0
      %658 = vdwg.mxu0
      %659 = vmatpush.bf16.msra.mxu0 0
      %660 = vmatpush.bf16.msra.mxu0 0
      %661 = vmatpush.bf16.msra.mxu0 0
      %662 = vmatpush.bf16.msra.mxu0 0
      %663 = vmatpush.bf16.msra.mxu0 0
      %664 = vmatpush.bf16.msra.mxu0 0
      %665 = vmatpush.bf16.msra.mxu0 0
      %666 = vmatpush.bf16.msra.mxu0 %v641
      %667 = vmatmul.bf16.gmra.mxu0 %v635
      %v668 = vpop.f32.mrf.mxu0
      %v669 = vadd.f32 0.0, %v668
      %v670 = vpop.f32.mrf.mxu0
      %671 = vdwg.mxu0
      %672 = vmatpush.bf16.msra.mxu0 0
      %673 = vmatpush.bf16.msra.mxu0 0
      %674 = vmatpush.bf16.msra.mxu0 0
      %675 = vmatpush.bf16.msra.mxu0 0
      %676 = vmatpush.bf16.msra.mxu0 0
      %677 = vmatpush.bf16.msra.mxu0 0
      %678 = vmatpush.bf16.msra.mxu0 0
      %679 = vmatpush.bf16.msra.mxu0 %v644
      %680 = vmatmul.bf16.gmra.mxu0 %v635
      %v681 = vpop.f32.mrf.mxu0
      %v682 = vadd.f32 0.0, %v681
      %v683 = vpop.f32.mrf.mxu0
      %684 = vdwg.mxu0
      %v685 = vadd.f32 %v620, %v656
      %v686 = vadd.f32 %v621, %v669
      %v687 = vadd.f32 %v622, %v682
      %s688 = scalar_lea.vmem %s1, 32
      %v689 = vld [vmem:[%s688] sm:$0xf]
      %690 = vrot.lane.b32.xlu0 %v182, 90
      %v691 = vpop.permute.xlu0 %690
      %692 = vrot.lane.b32.xlu0 %v183, 90
      %v693 = vpop.permute.xlu0 %692
      %694 = vrot.lane.b32.xlu0 %v184, 90
      %v695 = vpop.permute.xlu0 %694
      %vm696 = vcmask 736256
      %v697 = vsel %vm696, %v691, %v693
      %v698 = vsel %vm696, %v693, %v695
      %v700 = vsel %vm194, %v689, 0
      %v703 = vsel %vm198, %v697, 0
      %v706 = vsel %vm198, %v698, 0
      %v709 = vsel %vm198, %v695, 0
      %711 = vmatpush.bf16.msra.mxu0 0
      %712 = vmatpush.bf16.msra.mxu0 0
      %713 = vmatpush.bf16.msra.mxu0 0
      %714 = vmatpush.bf16.msra.mxu0 0
      %715 = vmatpush.bf16.msra.mxu0 0
      %716 = vmatpush.bf16.msra.mxu0 0
      %717 = vmatpush.bf16.msra.mxu0 0
      %718 = vmatpush.bf16.msra.mxu0 %v703
      %719 = vmatmul.bf16.gmra.mxu0 %v700
      %v720 = vpop.f32.mrf.mxu0
      %v721 = vadd.f32 0.0, %v720
      %v722 = vpop.f32.mrf.mxu0
      %723 = vdwg.mxu0
      %724 = vmatpush.bf16.msra.mxu0 0
      %725 = vmatpush.bf16.msra.mxu0 0
      %726 = vmatpush.bf16.msra.mxu0 0
      %727 = vmatpush.bf16.msra.mxu0 0
      %728 = vmatpush.bf16.msra.mxu0 0
      %729 = vmatpush.bf16.msra.mxu0 0
      %730 = vmatpush.bf16.msra.mxu0 0
      %731 = vmatpush.bf16.msra.mxu0 %v706
      %732 = vmatmul.bf16.gmra.mxu0 %v700
      %v733 = vpop.f32.mrf.mxu0
      %v734 = vadd.f32 0.0, %v733
      %v735 = vpop.f32.mrf.mxu0
      %736 = vdwg.mxu0
      %737 = vmatpush.bf16.msra.mxu0 0
      %738 = vmatpush.bf16.msra.mxu0 0
      %739 = vmatpush.bf16.msra.mxu0 0
      %740 = vmatpush.bf16.msra.mxu0 0
      %741 = vmatpush.bf16.msra.mxu0 0
      %742 = vmatpush.bf16.msra.mxu0 0
      %743 = vmatpush.bf16.msra.mxu0 0
      %744 = vmatpush.bf16.msra.mxu0 %v709
      %745 = vmatmul.bf16.gmra.mxu0 %v700
      %v746 = vpop.f32.mrf.mxu0
      %v747 = vadd.f32 0.0, %v746
      %v748 = vpop.f32.mrf.mxu0
      %749 = vdwg.mxu0
      %v750 = vadd.f32 %v685, %v721
      %v751 = vadd.f32 %v686, %v734
      %v752 = vadd.f32 %v687, %v747
      %v753 = vld [vmem:[%s2] sm:$0xff]
      %755 = vset.pattern.permute.xlu0 0
      %756 = vperm.xlu0 %755, %v753
      %v757 = vpop.permute.xlu0 %756
      %v759 = vadd.f32 %v750, %v757
      %v760 = vadd.f32 %v751, %v757
      %v761 = vadd.f32 %v752, %v757
      %vm762 = vcmp.gt.f32.partialorder %v759, 0.0
      %vm763 = vcmp.gt.f32.partialorder %v760, 0.0
      %vm764 = vcmp.gt.f32.partialorder %v761, 0.0
      %v765 = vmul.f32 %v759, 0.01
      %v766 = vmul.f32 %v760, 0.01
      %v767 = vmul.f32 %v761, 0.01
      %v768 = vsel %vm762, %v759, %v765
      %v769 = vsel %vm763, %v760, %v766
      %v770 = vsel %vm764, %v761, %v767
      %771 = vst [vmem:[%s170] sm:$0xff] %v768
      %772 = vst [vmem:[%s170 + $0x8] sm:$0xff] %v769
      %vm773 = vcmask 261120
      %774 = vst.msk [vmem:[%s170 + $0x10] sm:$0xff] %vm773, %v770
      %p775 = scmp.lt.s32.totalorder %s14, 1
      %s776 = scalar_select %p775, %s14, 1
      %s777 = smul.addr %s776, 3
      %s778 = smul.addr %s777, 8
      %s779 = scalar_lea.vmem %s3, %s778
      // Predicated region
      $region33: #{conv_block_forward.3} parent=31 // pred_check
        %p780 = pneg %p100
      $region34: #{conv_block_forward.3} parent=31 // pred_check_branch
        %782 = sbr.rel (%p780) target = $region36
      $region35: #{conv_block_forward.3} parent=31 // pred_region
        _
      $region36: #{conv_block_forward.3} parent=31 // pred_fallthru
        _
    $region32: #{conv_block_forward.3} parent=5 // pred_fallthru
      _
    %p783 = scmp.le.s32.totalorder 2, %s9
    // Predicated region
    $region37: #{conv_block_forward.3} parent=5 // pred_check
      %p784 = pneg %p783
    $region38: #{conv_block_forward.3} parent=5 // pred_check_branch
      %786 = sbr.rel (%p784) target = $region40
    $region39: #{conv_block_forward.3} parent=5 // pred_region
      %s787 = ssub.s32 %s9, 2
      // Predicated region
      $region41: #{conv_block_forward.3} parent=39 // pred_check
        %p788 = pneg %p106
      $region42: #{conv_block_forward.3} parent=39 // pred_check_branch
        %790 = sbr.rel (%p788) target = $region44
      $region43: #{conv_block_forward.3} parent=39 // pred_region
        %p791 = scmp.lt.s32.totalorder %s15, 1
        %s792 = scalar_select %p791, %s15, 1
        %s793 = smul.addr %s792, 3
        %s794 = smul.addr %s793, 8
        %s795 = scalar_lea.vmem %s3, %s794
      $region44: #{conv_block_forward.3} parent=39 // pred_fallthru
        _
    $region40: #{conv_block_forward.3} parent=5 // pred_fallthru
      _
  $region6: #{conv_block_forward.3} parent=0 // loop_footer
    %s13 = sadd.s32 1, %s9
  $region7: #{conv_block_forward.3} parent=0 // loop_footer_branch
    %8 = sbr.rel target = $region3
  $region8: #{conv_block_forward.3} parent=0 // loop_exit
    _

</llo_original>
